<compile_context>
chip_gen: v7x
topology: tpu7x:2x2x1
jax: 0.10.0
libtpu: 0.0.40
codegen_flags: <defaults>
</compile_context>

<pallas_src>
import jax
import jax.numpy as jnp
from jax.experimental import pallas as pl
from jax.experimental.pallas import tpu as pltpu


def _llama_mlp_kernel(x_ref, wgu_ref, wd_ref, o_ref, acc_ref):
    """Fused SwiGLU MLP tile.

    Grid = (Mpad // tm, I // ti).  Axis 0 (token-row tiles) is parallel;
    axis 1 (chunks of the intermediate dim) is a reduction into acc_ref.

      x_ref  : (tm, H)      token tile (same block across the reduction axis)
      wgu_ref: (H, 2*ti)    interleaved [gate_chunk | up_chunk] weights
      wd_ref : (ti, H)      down_proj weight chunk
      o_ref  : (tm, H)      output tile (written on last reduction step)
      acc_ref: (tm, H) f32  accumulator scratch
    """
    j = pl.program_id(1)

    @pl.when(j == 0)
    def _():
        acc_ref[...] = jnp.zeros_like(acc_ref)

    ti = wgu_ref.shape[1] // 2
    x = x_ref[...]
    # One wide MXU matmul producing both gate and up activations.
    gu = jnp.dot(x, wgu_ref[...], preferred_element_type=jnp.float32)
    gate = gu[:, :ti]
    up = gu[:, ti:]
    h = (gate * jax.nn.sigmoid(gate)) * up  # SiLU(gate) * up, in f32
    acc_ref[...] += jnp.dot(h.astype(wd_ref.dtype), wd_ref[...],
                            preferred_element_type=jnp.float32)

    @pl.when(j == pl.num_programs(1) - 1)
    def _():
        o_ref[...] = acc_ref[...].astype(o_ref.dtype)


def _round_up(x, m):
    return (x + m - 1) // m * m


def _vmem_capacity_bytes():
    """Physical VMEM bytes for the current generation (conservative fallback)."""
    try:
        return int(pltpu.get_tpu_info().vmem_capacity_bytes)
    except Exception:
        return 64 * 1024 * 1024  # v7x-sized: safe lower bound everywhere


def _tile_vmem_bytes(tm, ti, H, itemsize):
    # Double-buffered x tile, fused gate|up chunk, down chunk, output tile,
    # plus the resident f32 accumulator scratch.
    io = 2 * (tm * H + H * 2 * ti + ti * H + tm * H) * itemsize
    acc = tm * H * 4
    return io + acc


def _pick_tiles(M, H, I, itemsize, vmem_cap, tm=None, ti=None):
    """Largest (tm, ti) fitting ~70% of physical VMEM; prefers big token tiles."""
    budget = int(vmem_cap * 0.7)

    if ti is None:
        ti_cands = [c for c in (512, 256, 128) if c <= I and I % c == 0]
        if not ti_cands:
            ti_cands = [I]  # tiny / ragged intermediate: single full chunk
    else:
        ti_cands = [ti]

    if tm is None:
        tm_target = min(256, _round_up(M, 16))  # 16-row multiple for bf16 packing
        tm_cands = [c for c in (256, 128, 64, 32, 16) if c <= tm_target] or [tm_target]
    else:
        tm_cands = [tm]

    for tm_c in tm_cands:          # prefer large token tiles (weight amortization)
        for ti_c in ti_cands:      # then the largest intermediate chunk that fits
            if _tile_vmem_bytes(tm_c, ti_c, H, itemsize) <= budget:
                return tm_c, ti_c
    return tm_cands[-1], ti_cands[-1]


def _fuse_gate_up(w_gate, w_up, ti):
    """Interleave gate/up per ti-chunk -> (H, 2*I): chunk j is [gate_j | up_j].

    In a real model this should be precomputed once at weight-load time.
    """
    H, I = w_gate.shape
    G = I // ti
    wgu = jnp.stack([w_gate.reshape(H, G, ti), w_up.reshape(H, G, ti)], axis=2)
    return wgu.reshape(H, 2 * I)


def llama_mlp(x, w_gate, w_up, w_down, *, tm=None, ti=None):
    """x: (B, S, H); w_gate/w_up: (H, I); w_down: (I, H) -> (B, S, H)."""
    B, S, H = x.shape
    Hg, I = w_gate.shape
    assert Hg == H and w_up.shape == (H, I) and w_down.shape == (I, H)

    M = B * S
    itemsize = max(jnp.dtype(x.dtype).itemsize, jnp.dtype(w_gate.dtype).itemsize)

    vmem_cap = _vmem_capacity_bytes()
    tm, ti = _pick_tiles(M, H, I, itemsize, vmem_cap, tm, ti)

    # Pad the token dimension up to a multiple of tm (extra rows are zeros and
    # are sliced off afterwards; SwiGLU of zeros is zero, so no pollution).
    Mpad = _round_up(M, tm)
    x2 = x.reshape(M, H)
    if Mpad != M:
        x2 = jnp.pad(x2, ((0, Mpad - M), (0, 0)))

    wgu = _fuse_gate_up(w_gate, w_up, ti)

    grid_m = Mpad // tm
    grid_i = I // ti

    # Decode-shaped workload (one row tile, many weight chunks): the kernel is
    # pure weight streaming, so deepen the weight pipeline if VMEM allows.
    weight_pipeline = None
    if grid_m == 1 and grid_i >= 3:
        extra = (H * 2 * ti + ti * H) * itemsize  # one more buffer per weight input
        if _tile_vmem_bytes(tm, ti, H, itemsize) + extra < int(vmem_cap * 0.8):
            weight_pipeline = pl.Buffered(3)

    def _wspec(shape, index_map):
        if weight_pipeline is None:
            return pl.BlockSpec(shape, index_map)
        return pl.BlockSpec(shape, index_map, pipeline_mode=weight_pipeline)

    # Raise the scoped VMEM limit well above the conservative default, with
    # per-generation headroom (~100 MiB on v5e/v6e, ~56 MiB on v7x).
    vmem_limit = int(min(vmem_cap * 7 // 8, 100 * 1024 * 1024))

    cost = pl.CostEstimate(
        flops=6 * M * H * I,
        transcendentals=M * I,  # sigmoid in SiLU
        bytes_accessed=int((2 * M * H + grid_m * 3 * H * I) * itemsize),
    )

    out = pl.pallas_call(
        _llama_mlp_kernel,
        out_shape=jax.ShapeDtypeStruct((Mpad, H), x.dtype),
        grid_spec=pltpu.PrefetchScalarGridSpec(
            num_scalar_prefetch=0,
            grid=(grid_m, grid_i),
            in_specs=[
                pl.BlockSpec((tm, H), lambda i, j: (i, 0)),     # x tile (reused over j)
                _wspec((H, 2 * ti), lambda i, j: (0, j)),       # fused gate|up chunk
                _wspec((ti, H), lambda i, j: (j, 0)),           # down_proj chunk
            ],
            out_specs=pl.BlockSpec((tm, H), lambda i, j: (i, 0)),
            scratch_shapes=[pltpu.VMEM((tm, H), jnp.float32)],
        ),
        compiler_params=pltpu.CompilerParams(
            dimension_semantics=("parallel", "arbitrary"),
            vmem_limit_bytes=vmem_limit,
        ),
        cost_estimate=cost,
    )(x2, wgu, w_down)

    return out[:M].reshape(B, S, H)


if __name__ == "__main__":
    # Small, lane-aligned config: hidden=256, intermediate=1024, batch=2, seq=16
    # (multiples of 128 so the test exercises unmasked lane-dense stores and a
    #  multi-step reduction over the intermediate dimension).
    B, S, H, I = 2, 16, 256, 1024

    key = jax.random.PRNGKey(0)
    kx, kg, ku, kd = jax.random.split(key, 4)
    x = jax.random.normal(kx, (B, S, H), dtype=jnp.float32)
    # nn.Linear weights are (out, in); we store transposed (in, out) for x @ W.
    w_gate = jax.random.normal(kg, (H, I), dtype=jnp.float32) * 0.02
    w_up = jax.random.normal(ku, (H, I), dtype=jnp.float32) * 0.02
    w_down = jax.random.normal(kd, (I, H), dtype=jnp.float32) * 0.02

    # Pure-JAX reference (same default matmul precision as the kernel's MXU path).
    ref = (jax.nn.silu(x @ w_gate) * (x @ w_up)) @ w_down

    # 1) f32 path: correctness check (tolerance allows for MXU matmul precision
    #    and the different reduction-chunk accumulation order).
    out = jax.block_until_ready(llama_mlp(x, w_gate, w_up, w_down))
    assert out.shape == (B, S, H)
    assert jnp.allclose(out, ref, atol=1e-2, rtol=1e-2), "f32 mismatch vs reference"

    # 2) Ragged token count (exercises the row-padding path).
    x_odd = x[:1, :5]
    out_odd = jax.block_until_ready(llama_mlp(x_odd, w_gate, w_up, w_down))
    assert jnp.allclose(out_odd, ref[:1, :5], atol=1e-2, rtol=1e-2), "padded-M mismatch"

    # 3) bf16 path (the intended perf configuration), looser tolerance.
    xb, wgb, wub, wdb = (a.astype(jnp.bfloat16) for a in (x, w_gate, w_up, w_down))
    out_bf16 = jax.block_until_ready(llama_mlp(xb, wgb, wub, wdb))
    assert jnp.allclose(out_bf16.astype(jnp.float32), ref, atol=5e-2, rtol=5e-2), \
        "bf16 mismatch vs reference"

    # TODO(synk): Column/RowParallelLinear tensor-parallel sharding is not
    # modeled; this is the single-device (nn.Linear) forward path.
    print("KERNEL_OK")
</pallas_src>

<mosaic_0001>
module attributes {stable_mosaic.version = 11 : i64} {
  func.func @_llama_mlp_kernel(%arg0: i32, %arg1: i32, %arg2: memref<32x256xf32, #tpu.memory_space<vmem>>, %arg3: memref<256x1024xf32, #tpu.memory_space<vmem>>, %arg4: memref<512x256xf32, #tpu.memory_space<vmem>>, %arg5: memref<32x256xf32, #tpu.memory_space<vmem>>, %arg6: memref<32x256xf32, #tpu.memory_space<vmem>>) attributes {dimension_semantics = [#tpu.dimension_semantics<parallel>, #tpu.dimension_semantics<arbitrary>], iteration_bounds = array<i64: 1, 2>, scalar_prefetch = 0 : i64, scratch_operands = 1 : i64, tpu.core_type = #tpu.core_type<tc>, window_params = [{transform_indices = @transform_0, window_bounds = array<i64: 32, 256>}, {transform_indices = @transform_1, window_bounds = array<i64: 256, 1024>}, {transform_indices = @transform_2, window_bounds = array<i64: 512, 256>}, {transform_indices = @transform_3, window_bounds = array<i64: 32, 256>}]} {
    %c0_i32 = arith.constant 0 : i32
    %0 = arith.cmpi eq, %arg1, %c0_i32 : i32
    %1 = arith.extui %0 : i1 to i32
    %c0_i32_0 = arith.constant 0 : i32
    %2 = arith.cmpi ne, %1, %c0_i32_0 : i32
    scf.if %2 {
      %cst_13 = arith.constant 0.000000e+00 : f32
      %23 = vector.broadcast %cst_13 : f32 to vector<32x256xf32>
      %c0_14 = arith.constant 0 : index
      %c0_15 = arith.constant 0 : index
      %24 = vector.load %arg6[%c0_14, %c0_15] : memref<32x256xf32, #tpu.memory_space<vmem>>, vector<32x256xf32>
      tpu.vector_store %arg6[%c0_14, %c0_15], %23 {strides = array<i32>} : memref<32x256xf32, #tpu.memory_space<vmem>>, vector<32x256xf32>,
    } else {
    }
    %c0 = arith.constant 0 : index
    %c0_1 = arith.constant 0 : index
    %3 = vector.load %arg2[%c0, %c0_1] : memref<32x256xf32, #tpu.memory_space<vmem>>, vector<32x256xf32>
    %c0_2 = arith.constant 0 : index
    %c0_3 = arith.constant 0 : index
    %4 = vector.load %arg3[%c0_2, %c0_3] : memref<256x1024xf32, #tpu.memory_space<vmem>>, vector<256x1024xf32>
    %cst = arith.constant dense<0.000000e+00> : vector<32x1024xf32>
    %5 = tpu.matmul %3, %4, %cst {dimension_numbers = #tpu.dot_dimension_numbers<[1], [0], [0], [1], [0, 0, 1, 1], [], []>} : vector<32x256xf32>, vector<256x1024xf32>, vector<32x1024xf32> -> vector<32x1024xf32>
    %6 = vector.extract_strided_slice %5 {offsets = [0, 0], sizes = [32, 512], strides = [1, 1]} : vector<32x1024xf32> to vector<32x512xf32>
    %7 = vector.extract_strided_slice %5 {offsets = [0, 512], sizes = [32, 512], strides = [1, 1]} : vector<32x1024xf32> to vector<32x512xf32>
    %8 = arith.negf %6 : vector<32x512xf32>
    %9 = math.exp %8 : vector<32x512xf32>
    %cst_4 = arith.constant 1.000000e+00 : f32
    %10 = vector.broadcast %cst_4 : f32 to vector<32x512xf32>
    %11 = arith.addf %10, %9 : vector<32x512xf32>
    %12 = arith.divf %10, %11 : vector<32x512xf32>
    %13 = arith.mulf %6, %12 : vector<32x512xf32>
    %14 = arith.mulf %13, %7 : vector<32x512xf32>
    %c0_5 = arith.constant 0 : index
    %c0_6 = arith.constant 0 : index
    %15 = vector.load %arg6[%c0_5, %c0_6] : memref<32x256xf32, #tpu.memory_space<vmem>>, vector<32x256xf32>
    %c0_7 = arith.constant 0 : index
    %c0_8 = arith.constant 0 : index
    %16 = vector.load %arg4[%c0_7, %c0_8] : memref<512x256xf32, #tpu.memory_space<vmem>>, vector<512x256xf32>
    %cst_9 = arith.constant dense<0.000000e+00> : vector<32x256xf32>
    %17 = tpu.matmul %14, %16, %cst_9 {dimension_numbers = #tpu.dot_dimension_numbers<[1], [0], [0], [1], [0, 0, 1, 1], [], []>} : vector<32x512xf32>, vector<512x256xf32>, vector<32x256xf32> -> vector<32x256xf32>
    %18 = arith.addf %15, %17 : vector<32x256xf32>
    %c0_10 = arith.constant 0 : index
    %c0_11 = arith.constant 0 : index
    %19 = vector.load %arg6[%c0_10, %c0_11] : memref<32x256xf32, #tpu.memory_space<vmem>>, vector<32x256xf32>
    tpu.vector_store %arg6[%c0_10, %c0_11], %18 {strides = array<i32>} : memref<32x256xf32, #tpu.memory_space<vmem>>, vector<32x256xf32>,
    %c1_i32 = arith.constant 1 : i32
    %20 = arith.cmpi eq, %arg1, %c1_i32 : i32
    %21 = arith.extui %20 : i1 to i32
    %c0_i32_12 = arith.constant 0 : i32
    %22 = arith.cmpi ne, %21, %c0_i32_12 : i32
    scf.if %22 {
      %c0_13 = arith.constant 0 : index
      %c0_14 = arith.constant 0 : index
      %23 = vector.load %arg6[%c0_13, %c0_14] : memref<32x256xf32, #tpu.memory_space<vmem>>, vector<32x256xf32>
      %c0_15 = arith.constant 0 : index
      %c0_16 = arith.constant 0 : index
      %24 = vector.load %arg5[%c0_15, %c0_16] : memref<32x256xf32, #tpu.memory_space<vmem>>, vector<32x256xf32>
      tpu.vector_store %arg5[%c0_15, %c0_16], %23 {strides = array<i32>} : memref<32x256xf32, #tpu.memory_space<vmem>>, vector<32x256xf32>,
    } else {
    }
    return
  }
  func.func @transform_0(%arg0: i32, %arg1: i32) -> (i32, i32) {
    %c0_i32 = arith.constant 0 : i32
    %c0_i32_0 = arith.constant 0 : i32
    return %arg0, %c0_i32 : i32, i32
  }
  func.func @transform_1(%arg0: i32, %arg1: i32) -> (i32, i32) {
    %c0_i32 = arith.constant 0 : i32
    %c0_i32_0 = arith.constant 0 : i32
    return %c0_i32, %arg1 : i32, i32
  }
  func.func @transform_2(%arg0: i32, %arg1: i32) -> (i32, i32) {
    %c0_i32 = arith.constant 0 : i32
    %c0_i32_0 = arith.constant 0 : i32
    return %arg1, %c0_i32 : i32, i32
  }
  func.func @transform_3(%arg0: i32, %arg1: i32) -> (i32, i32) {
    %c0_i32 = arith.constant 0 : i32
    %c0_i32_0 = arith.constant 0 : i32
    return %arg0, %c0_i32 : i32, i32
  }
}

</mosaic_0001>

<llo_original>
// kernel: tpu_custom_call.1
$region0: #{tpu_custom_call.1}
  #allocation0 [shape = 'u32[]', space=smem, size = 0x4, offset = 0x4, fixed_abs, tag = 'smem constant byte address 0x4 - core index']
  #allocation1 [shape = 'u32[144,128]{1,0:T(1,128)}', space=vmem, size = 0x12000, scoped, tag = 'internal scratch']
  #allocation2 [shape = 'f32[32,256]{1,0:T(8,128)}', space=vmem, size = 0x8000, scoped, tag = 'scratch operand']
  %s0 = inlined_call_operand.hbm [shape: f32[32,256], index: 0, kind: input, shape index: {}]
  %s1 = inlined_call_operand.hbm [shape: f32[256,2048], index: 1, kind: input, shape index: {}]
  %s2 = inlined_call_operand.hbm [shape: f32[1024,256], index: 2, kind: input, shape index: {}]
  %s3 = inlined_call_operand.hbm [shape: f32[32,256], index: 3, kind: output, shape index: {}]
  %s4 = sld [smem:[#allocation0]]
  $region65: #{tpu_custom_call.1} parent=0
    _
  %s6 = ssub.s32 1, %s4
  %s7 = scalar_select 0, %s6, %s4
  $region1: #{tpu_custom_call.1} parent=0
    #allocation3 [shape = 'u8[32768]{0}', space=vmem, size = 0x8000, scoped, tag = 'input window, operand 0, single buffered']
    #allocation4 [shape = 's32[2]{0}', space=sflag, size = 0x8, scoped, tag = 'scoped memory for tpu_custom_call.1']
    #allocation5 [shape = 's32[2]{0}', space=sflag, size = 0x8, scoped, tag = 'scoped memory for tpu_custom_call.1']
    #allocation6 [shape = 'u8[2097152]{0}', space=vmem, size = 0x200000, scoped, tag = 'input window, operand 1']
    #allocation7 [shape = 's32[2]{0}', space=sflag, size = 0x8, scoped, tag = 'scoped memory for tpu_custom_call.1']
    #allocation8 [shape = 'u8[1048576]{0}', space=vmem, size = 0x100000, scoped, tag = 'input window, operand 2']
    #allocation9 [shape = 'u8[32768]{0}', space=vmem, size = 0x8000, scoped, tag = 'output window, operand 0, single buffered']
    %8 = vsyncpa [#allocation4], 0
    %9 = vsyncpa [#allocation7], 0
    %s10 = scalar_lea.sflag [#allocation7], 1
    %11 = vsyncpa %s10, 0
    %12 = vsyncpa [#allocation5], 0
    loop: start=0, step=1, limit=4
    $region2: #{tpu_custom_call.1} parent=1 // loop_pre_header
      _
    $region3: #{tpu_custom_call.1} parent=1 // loop_header
      %s14 = sphi 0, %s18
      %p15 = scmp.ge.s32.totalorder %s14, 4
      %s21 = sphi 0, %s33
      %s22 = sphi 0, %s29
      %s23 = sphi 0, %s21
      %s24 = sphi 0, %s22
      %s25 = sphi 0, %s23
      %s26 = sphi 0, %s24
      %s36 = sphi 0, %s38
      %s39 = sphi 0, %s36
      %s40 = sphi 0, %s39
      %s56 = sphi 0, %s40
      %s62 = sphi 0, %s64
      %s65 = sphi 0, %s62
      %s66 = sphi 0, %s65
      %s82 = sphi 0, %s66
      %s88 = sphi 0, %s90
      %s91 = sphi 0, %s88
      %s92 = sphi 0, %s91
      %s108 = sphi 0, %s92
      %s114 = sphi 0, %s116
      %s117 = sphi 0, %s114
      %s118 = sphi 0, %s117
      %s134 = sphi 0, %s118
    $region4: #{tpu_custom_call.1} parent=1 // loop_header_branch
      %17 = sbr.rel (%p15) target = $region8
    $region5: #{tpu_custom_call.1} parent=1 // loop_body
      %s19 = ssub.s32 %s14, 1
      %s20 = ssub.s32 %s14, 2
      %s27 = sadd.s32 1, %s22
      %p28 = scmp.ge.s32.totalorder %s27, 2
      %s29 = scalar_select %p28, 0, %s27
      %s30 = sadd.s32 1, %s21
      %s31 = scalar_select %p28, %s30, %s21
      %p32 = scmp.ge.s32.totalorder %s31, 1
      %s33 = scalar_select %p32, 0, %s31
      %s34 = ssub.s32 %s21, %s33
      %p35 = scmp.eq.s32.totalorder %s34, 0
      %s37 = sadd.s32 %s36, 1
      %s38 = scalar_select %p35, %s36, %s37
      %p41 = pneg %p35
      %p42 = scmp.eq.s32.totalorder %s14, 1
      %p43 = por %p41, %p42
      %p44 = scmp.ne.s32.totalorder %s36, %s39
      %p45 = scmp.eq.s32.totalorder %s14, 0
      %p46 = por %p44, %p45
      %p47 = scmp.ne.s32.totalorder %s36, %s39
      %p48 = scmp.eq.s32.totalorder %s19, 1
      %p49 = por %p47, %p48
      %p50 = scmp.ne.s32.totalorder %s39, %s40
      %p51 = scmp.eq.s32.totalorder %s19, 0
      %p52 = por %p50, %p51
      %p53 = scmp.ne.s32.totalorder %s39, %s40
      %p54 = scmp.eq.s32.totalorder %s20, 1
      %p55 = por %p53, %p54
      %p57 = scmp.ne.s32.totalorder %s40, %s56
      %p58 = scmp.eq.s32.totalorder %s20, 0
      %p59 = por %p57, %p58
      %s60 = ssub.s32 %s22, %s29
      %p61 = scmp.eq.s32.totalorder %s60, 0
      %s63 = sadd.s32 %s62, 1
      %s64 = scalar_select %p61, %s62, %s63
      %p67 = pneg %p61
      %p68 = scmp.eq.s32.totalorder %s14, 1
      %p69 = por %p67, %p68
      %p70 = scmp.ne.s32.totalorder %s62, %s65
      %p71 = scmp.eq.s32.totalorder %s14, 0
      %p72 = por %p70, %p71
      %p73 = scmp.ne.s32.totalorder %s62, %s65
      %p74 = scmp.eq.s32.totalorder %s19, 1
      %p75 = por %p73, %p74
      %p76 = scmp.ne.s32.totalorder %s65, %s66
      %p77 = scmp.eq.s32.totalorder %s19, 0
      %p78 = por %p76, %p77
      %p79 = scmp.ne.s32.totalorder %s65, %s66
      %p80 = scmp.eq.s32.totalorder %s20, 1
      %p81 = por %p79, %p80
      %p83 = scmp.ne.s32.totalorder %s66, %s82
      %p84 = scmp.eq.s32.totalorder %s20, 0
      %p85 = por %p83, %p84
      %s86 = ssub.s32 %s22, %s29
      %p87 = scmp.eq.s32.totalorder %s86, 0
      %s89 = sadd.s32 %s88, 1
      %s90 = scalar_select %p87, %s88, %s89
      %p93 = pneg %p87
      %p94 = scmp.eq.s32.totalorder %s14, 1
      %p95 = por %p93, %p94
      %p96 = scmp.ne.s32.totalorder %s88, %s91
      %p97 = scmp.eq.s32.totalorder %s14, 0
      %p98 = por %p96, %p97
      %p99 = scmp.ne.s32.totalorder %s88, %s91
      %p100 = scmp.eq.s32.totalorder %s19, 1
      %p101 = por %p99, %p100
      %p102 = scmp.ne.s32.totalorder %s91, %s92
      %p103 = scmp.eq.s32.totalorder %s19, 0
      %p104 = por %p102, %p103
      %p105 = scmp.ne.s32.totalorder %s91, %s92
      %p106 = scmp.eq.s32.totalorder %s20, 1
      %p107 = por %p105, %p106
      %p109 = scmp.ne.s32.totalorder %s92, %s108
      %p110 = scmp.eq.s32.totalorder %s20, 0
      %p111 = por %p109, %p110
      %s112 = ssub.s32 %s21, %s33
      %p113 = scmp.eq.s32.totalorder %s112, 0
      %s115 = sadd.s32 %s114, 1
      %s116 = scalar_select %p113, %s114, %s115
      %p119 = pneg %p113
      %p120 = scmp.eq.s32.totalorder %s14, 1
      %p121 = por %p119, %p120
      %p122 = scmp.ne.s32.totalorder %s114, %s117
      %p123 = scmp.eq.s32.totalorder %s14, 0
      %p124 = por %p122, %p123
      %p125 = scmp.ne.s32.totalorder %s114, %s117
      %p126 = scmp.eq.s32.totalorder %s19, 1
      %p127 = por %p125, %p126
      %p128 = scmp.ne.s32.totalorder %s117, %s118
      %p129 = scmp.eq.s32.totalorder %s19, 0
      %p130 = por %p128, %p129
      %p131 = scmp.ne.s32.totalorder %s117, %s118
      %p132 = scmp.eq.s32.totalorder %s20, 1
      %p133 = por %p131, %p132
      %p135 = scmp.ne.s32.totalorder %s118, %s134
      %p136 = scmp.eq.s32.totalorder %s20, 0
      %p137 = por %p135, %p136
      %p138 = scmp.le.s32.totalorder 1, %s14
      %p139 = scmp.lt.s32.totalorder %s14, 3
      %p140 = pnand %p138, %p139
      %p141 = pneg %p140
      // Predicated region
      $region9: #{tpu_custom_call.1} parent=5 // pred_check
        _
      $region10: #{tpu_custom_call.1} parent=5 // pred_check_branch
        %143 = sbr.rel (%p140) target = $region12
      $region11: #{tpu_custom_call.1} parent=5 // pred_region
        %s144 = ssub.s32 %s14, 1
        // Predicated region
        $region13: #{tpu_custom_call.1} parent=11 // pred_check
          %p145 = pneg %p52
        $region14: #{tpu_custom_call.1} parent=11 // pred_check_branch
          %147 = sbr.rel (%p145) target = $region16
        $region15: #{tpu_custom_call.1} parent=11 // pred_region
          %s148 = smul.u32 4, %s23
          %s150 = ssub.s32 1024, 1024
          %151 = vsyncadd [#allocation4], %s150
          %s152 = smul.addr %s148, 2
          %s153 = smul.addr %s152, 128
          %s154 = scalar_lea.hbm %s0, %s153
          %s155 = sshll.u32 [#allocation3], 4
          %s156 = int_to_ptr.vmem [resolvable:$true] %s155
          %161 = dma.hbm_to_vmem [thread:$0]  %s154, 1024, %s156, [#allocation4], 256, 256, 16
        $region16: #{tpu_custom_call.1} parent=11 // pred_fallthru
          _
      $region12: #{tpu_custom_call.1} parent=5 // pred_fallthru
        _
      %p162 = scmp.lt.s32.totalorder %s14, 2
      // Predicated region
      $region17: #{tpu_custom_call.1} parent=5 // pred_check
        %p163 = pneg %p162
      $region18: #{tpu_custom_call.1} parent=5 // pred_check_branch
        %165 = sbr.rel (%p163) target = $region20
      $region19: #{tpu_custom_call.1} parent=5 // pred_region
        // Predicated region
        $region21: #{tpu_custom_call.1} parent=19 // pred_check
          %p166 = pneg %p72
        $region22: #{tpu_custom_call.1} parent=19 // pred_check_branch
          %168 = sbr.rel (%p166) target = $region24
        $region23: #{tpu_custom_call.1} parent=19 // pred_region
          %s169 = sand.u32 %s14, 1
          %s170 = scalar_lea.sflag [#allocation7], %s169
          %s171 = sand.u32 %s62, 1
          %s172 = smul.addr %s171, 2048
          %s173 = scalar_lea.vmem [#allocation6], %s172
          %s174 = smul.u32 8, %s22
          %s176 = ssub.s32 32768, 32768
          %177 = vsyncadd %s170, %s176
          %s178 = smul.addr %s174, 128
          %s179 = scalar_lea.hbm %s1, %s178
          %s180 = sshll.u32 %s173, 4
          %s181 = int_to_ptr.vmem [resolvable:$true] %s180
          %186 = dma.hbm_to_vmem [thread:$0]  %s179, 32768, %s181, %s170, 2048, 1024, 64
        $region24: #{tpu_custom_call.1} parent=19 // pred_fallthru
          _
        // Predicated region
        $region25: #{tpu_custom_call.1} parent=19 // pred_check
          %p187 = pneg %p98
        $region26: #{tpu_custom_call.1} parent=19 // pred_check_branch
          %189 = sbr.rel (%p187) target = $region28
        $region27: #{tpu_custom_call.1} parent=19 // pred_region
          %s190 = sand.u32 %s14, 1
          %s191 = scalar_lea.sflag [#allocation7], %s190
          %s192 = sand.u32 %s88, 1
          %s193 = smul.addr %s192, 1024
          %s194 = scalar_lea.vmem [#allocation8], %s193
          %s195 = smul.u32 64, %s22
          %s197 = ssub.s32 16384, 16384
          %198 = vsyncadd %s191, %s197
          %s199 = smul.addr %s195, 2
          %s200 = smul.addr %s199, 128
          %s201 = scalar_lea.hbm %s2, %s200
          %s202 = sshll.u32 %s194, 4
          %s203 = int_to_ptr.vmem [resolvable:$true] %s202
          %208 = dma.hbm_to_vmem [thread:$0]  %s201, 16384, %s203, %s191, 256, 256, 16
        $region28: #{tpu_custom_call.1} parent=19 // pred_fallthru
          _
      $region20: #{tpu_custom_call.1} parent=5 // pred_fallthru
        _
      %p209 = scmp.le.s32.totalorder 1, %s14
      %p210 = scmp.lt.s32.totalorder %s14, 3
      %p211 = pnand %p209, %p210
      %p212 = pneg %p211
      // Predicated region
      $region29: #{tpu_custom_call.1} parent=5 // pred_check
        _
      $region30: #{tpu_custom_call.1} parent=5 // pred_check_branch
        %214 = sbr.rel (%p211) target = $region32
      $region31: #{tpu_custom_call.1} parent=5 // pred_region
        %s215 = ssub.s32 %s14, 1
        // Predicated region
        $region33: #{tpu_custom_call.1} parent=31 // pred_check
          %p216 = pneg %p52
        $region34: #{tpu_custom_call.1} parent=31 // pred_check_branch
          %218 = sbr.rel (%p216) target = $region36
        $region35: #{tpu_custom_call.1} parent=31 // pred_region
          %219 = dma.done [#allocation4], 1024
        $region36: #{tpu_custom_call.1} parent=31 // pred_fallthru
          _
        %s220 = sand.u32 %s19, 1
        %s221 = scalar_lea.sflag [#allocation7], %s220
        %s222 = sand.u32 %s65, 1
        %s223 = smul.addr %s222, 2048
        %s224 = scalar_lea.vmem [#allocation6], %s223
        // Predicated region
        $region37: #{tpu_custom_call.1} parent=31 // pred_check
          %p225 = pneg %p78
        $region38: #{tpu_custom_call.1} parent=31 // pred_check_branch
          %227 = sbr.rel (%p225) target = $region40
        $region39: #{tpu_custom_call.1} parent=31 // pred_region
          %228 = dma.done %s221, 32768
        $region40: #{tpu_custom_call.1} parent=31 // pred_fallthru
          _
        %s229 = sand.u32 %s19, 1
        %s230 = scalar_lea.sflag [#allocation7], %s229
        %s231 = sand.u32 %s91, 1
        %s232 = smul.addr %s231, 1024
        %s233 = scalar_lea.vmem [#allocation8], %s232
        // Predicated region
        $region41: #{tpu_custom_call.1} parent=31 // pred_check
          %p234 = pneg %p104
        $region42: #{tpu_custom_call.1} parent=31 // pred_check_branch
          %236 = sbr.rel (%p234) target = $region44
        $region43: #{tpu_custom_call.1} parent=31 // pred_region
          %237 = dma.done %s230, 16384
        $region44: #{tpu_custom_call.1} parent=31 // pred_fallthru
          _
        %p238 = pneg %p52
        %p239 = pneg %p49
        %s240 = sand.u32 %s19, 1
        %s241 = scalar_lea.sflag [#allocation7], %s240
        %s242 = sand.u32 %s65, 1
        %s243 = smul.addr %s242, 2048
        %s244 = scalar_lea.vmem [#allocation6], %s243
        %p245 = pneg %p78
        %p246 = pneg %p75
        %s247 = sand.u32 %s19, 1
        %s248 = scalar_lea.sflag [#allocation7], %s247
        %s249 = sand.u32 %s91, 1
        %s250 = smul.addr %s249, 1024
        %s251 = scalar_lea.vmem [#allocation8], %s250
        %p252 = pneg %p104
        %p253 = pneg %p101
        %p254 = pneg %p130
        %p255 = pneg %p127
        %s256 = smul.u32 4, %s23
        %s257 = smul.u32 8, %s24
        %s258 = smul.u32 64, %s24
        %s259 = smul.u32 4, %s23
        %p260 = scmp.eq.s32.totalorder %s24, 0
        // Predicated region
        $region45: #{tpu_custom_call.1} parent=31 // pred_check
          %p261 = pneg %p260
        $region46: #{tpu_custom_call.1} parent=31 // pred_check_branch
          %263 = sbr.rel (%p261) target = $region48
        $region47: #{tpu_custom_call.1} parent=31 // pred_region
          %264 = vst [vmem:[#allocation2] sm:$0xff] 0.0
          %265 = vst [vmem:[#allocation2 + $0x8] sm:$0xff] 0.0
          %266 = vst [vmem:[#allocation2 + $0x10] sm:$0xff] 0.0
          %267 = vst [vmem:[#allocation2 + $0x18] sm:$0xff] 0.0
          %268 = vst [vmem:[#allocation2 + $0x20] sm:$0xff] 0.0
          %269 = vst [vmem:[#allocation2 + $0x28] sm:$0xff] 0.0
          %270 = vst [vmem:[#allocation2 + $0x30] sm:$0xff] 0.0
          %271 = vst [vmem:[#allocation2 + $0x38] sm:$0xff] 0.0
        $region48: #{tpu_custom_call.1} parent=31 // pred_fallthru
          _
        %v272 = vld [vmem:[#allocation3] sm:$0xff]
        %v273 = vld [vmem:[#allocation3 + $0x8] sm:$0xff]
        %v274 = vld [vmem:[#allocation3 + $0x10] sm:$0xff]
        %v275 = vld [vmem:[#allocation3 + $0x18] sm:$0xff]
        %v276 = vld [vmem:[#allocation3 + $0x20] sm:$0xff]
        %v277 = vld [vmem:[#allocation3 + $0x28] sm:$0xff]
        %v278 = vld [vmem:[#allocation3 + $0x30] sm:$0xff]
        %v279 = vld [vmem:[#allocation3 + $0x38] sm:$0xff]
        %v280 = vld [vmem:[%s224] sm:$0xff]
        %v281 = vld [vmem:[%s224 + $0x8] sm:$0xff]
        %v282 = vld [vmem:[%s224 + $0x10] sm:$0xff]
        %v283 = vld [vmem:[%s224 + $0x18] sm:$0xff]
        %v284 = vld [vmem:[%s224 + $0x20] sm:$0xff]
        %v285 = vld [vmem:[%s224 + $0x28] sm:$0xff]
        %v286 = vld [vmem:[%s224 + $0x30] sm:$0xff]
        %v287 = vld [vmem:[%s224 + $0x38] sm:$0xff]
        %v288 = vld [vmem:[%s224 + $0x40] sm:$0xff]
        %v289 = vld [vmem:[%s224 + $0x48] sm:$0xff]
        %v290 = vld [vmem:[%s224 + $0x50] sm:$0xff]
        %v291 = vld [vmem:[%s224 + $0x58] sm:$0xff]
        %v292 = vld [vmem:[%s224 + $0x60] sm:$0xff]
        %v293 = vld [vmem:[%s224 + $0x68] sm:$0xff]
        %v294 = vld [vmem:[%s224 + $0x70] sm:$0xff]
        %v295 = vld [vmem:[%s224 + $0x78] sm:$0xff]
        %v296 = vld [vmem:[%s224 + $0x80] sm:$0xff]
        %v297 = vld [vmem:[%s224 + $0x88] sm:$0xff]
        %v298 = vld [vmem:[%s224 + $0x90] sm:$0xff]
        %v299 = vld [vmem:[%s224 + $0x98] sm:$0xff]
        %v300 = vld [vmem:[%s224 + $0xa0] sm:$0xff]
        %v301 = vld [vmem:[%s224 + $0xa8] sm:$0xff]
        %v302 = vld [vmem:[%s224 + $0xb0] sm:$0xff]
        %v303 = vld [vmem:[%s224 + $0xb8] sm:$0xff]
        %v304 = vld [vmem:[%s224 + $0xc0] sm:$0xff]
        %v305 = vld [vmem:[%s224 + $0xc8] sm:$0xff]
        %v306 = vld [vmem:[%s224 + $0xd0] sm:$0xff]
        %v307 = vld [vmem:[%s224 + $0xd8] sm:$0xff]
        %v308 = vld [vmem:[%s224 + $0xe0] sm:$0xff]
        %v309 = vld [vmem:[%s224 + $0xe8] sm:$0xff]
        %v310 = vld [vmem:[%s224 + $0xf0] sm:$0xff]
        %v311 = vld [vmem:[%s224 + $0xf8] sm:$0xff]
        %v312 = vld [vmem:[%s224 + $0x100] sm:$0xff]
        %v313 = vld [vmem:[%s224 + $0x108] sm:$0xff]
        %v314 = vld [vmem:[%s224 + $0x110] sm:$0xff]
        %v315 = vld [vmem:[%s224 + $0x118] sm:$0xff]
        %v316 = vld [vmem:[%s224 + $0x120] sm:$0xff]
        %v317 = vld [vmem:[%s224 + $0x128] sm:$0xff]
        %v318 = vld [vmem:[%s224 + $0x130] sm:$0xff]
        %v319 = vld [vmem:[%s224 + $0x138] sm:$0xff]
        %v320 = vld [vmem:[%s224 + $0x140] sm:$0xff]
        %v321 = vld [vmem:[%s224 + $0x148] sm:$0xff]
        %v322 = vld [vmem:[%s224 + $0x150] sm:$0xff]
        %v323 = vld [vmem:[%s224 + $0x158] sm:$0xff]
        %v324 = vld [vmem:[%s224 + $0x160] sm:$0xff]
        %v325 = vld [vmem:[%s224 + $0x168] sm:$0xff]
        %v326 = vld [vmem:[%s224 + $0x170] sm:$0xff]
        %v327 = vld [vmem:[%s224 + $0x178] sm:$0xff]
        %v328 = vld [vmem:[%s224 + $0x180] sm:$0xff]
        %v329 = vld [vmem:[%s224 + $0x188] sm:$0xff]
        %v330 = vld [vmem:[%s224 + $0x190] sm:$0xff]
        %v331 = vld [vmem:[%s224 + $0x198] sm:$0xff]
        %v332 = vld [vmem:[%s224 + $0x1a0] sm:$0xff]
        %v333 = vld [vmem:[%s224 + $0x1a8] sm:$0xff]
        %v334 = vld [vmem:[%s224 + $0x1b0] sm:$0xff]
        %v335 = vld [vmem:[%s224 + $0x1b8] sm:$0xff]
        %v336 = vld [vmem:[%s224 + $0x1c0] sm:$0xff]
        %v337 = vld [vmem:[%s224 + $0x1c8] sm:$0xff]
        %v338 = vld [vmem:[%s224 + $0x1d0] sm:$0xff]
        %v339 = vld [vmem:[%s224 + $0x1d8] sm:$0xff]
        %v340 = vld [vmem:[%s224 + $0x1e0] sm:$0xff]
        %v341 = vld [vmem:[%s224 + $0x1e8] sm:$0xff]
        %v342 = vld [vmem:[%s224 + $0x1f0] sm:$0xff]
        %v343 = vld [vmem:[%s224 + $0x1f8] sm:$0xff]
        %v344 = vld [vmem:[%s224 + $0x200] sm:$0xff]
        %v345 = vld [vmem:[%s224 + $0x208] sm:$0xff]
        %v346 = vld [vmem:[%s224 + $0x210] sm:$0xff]
        %v347 = vld [vmem:[%s224 + $0x218] sm:$0xff]
        %v348 = vld [vmem:[%s224 + $0x220] sm:$0xff]
        %v349 = vld [vmem:[%s224 + $0x228] sm:$0xff]
        %v350 = vld [vmem:[%s224 + $0x230] sm:$0xff]
        %v351 = vld [vmem:[%s224 + $0x238] sm:$0xff]
        %v352 = vld [vmem:[%s224 + $0x240] sm:$0xff]
        %v353 = vld [vmem:[%s224 + $0x248] sm:$0xff]
        %v354 = vld [vmem:[%s224 + $0x250] sm:$0xff]
        %v355 = vld [vmem:[%s224 + $0x258] sm:$0xff]
        %v356 = vld [vmem:[%s224 + $0x260] sm:$0xff]
        %v357 = vld [vmem:[%s224 + $0x268] sm:$0xff]
        %v358 = vld [vmem:[%s224 + $0x270] sm:$0xff]
        %v359 = vld [vmem:[%s224 + $0x278] sm:$0xff]
        %v360 = vld [vmem:[%s224 + $0x280] sm:$0xff]
        %v361 = vld [vmem:[%s224 + $0x288] sm:$0xff]
        %v362 = vld [vmem:[%s224 + $0x290] sm:$0xff]
        %v363 = vld [vmem:[%s224 + $0x298] sm:$0xff]
        %v364 = vld [vmem:[%s224 + $0x2a0] sm:$0xff]
        %v365 = vld [vmem:[%s224 + $0x2a8] sm:$0xff]
        %v366 = vld [vmem:[%s224 + $0x2b0] sm:$0xff]
        %v367 = vld [vmem:[%s224 + $0x2b8] sm:$0xff]
        %v368 = vld [vmem:[%s224 + $0x2c0] sm:$0xff]
        %v369 = vld [vmem:[%s224 + $0x2c8] sm:$0xff]
        %v370 = vld [vmem:[%s224 + $0x2d0] sm:$0xff]
        %v371 = vld [vmem:[%s224 + $0x2d8] sm:$0xff]
        %v372 = vld [vmem:[%s224 + $0x2e0] sm:$0xff]
        %v373 = vld [vmem:[%s224 + $0x2e8] sm:$0xff]
        %v374 = vld [vmem:[%s224 + $0x2f0] sm:$0xff]
        %v375 = vld [vmem:[%s224 + $0x2f8] sm:$0xff]
        %v376 = vld [vmem:[%s224 + $0x300] sm:$0xff]
        %v377 = vld [vmem:[%s224 + $0x308] sm:$0xff]
        %v378 = vld [vmem:[%s224 + $0x310] sm:$0xff]
        %v379 = vld [vmem:[%s224 + $0x318] sm:$0xff]
        %v380 = vld [vmem:[%s224 + $0x320] sm:$0xff]
        %v381 = vld [vmem:[%s224 + $0x328] sm:$0xff]
        %v382 = vld [vmem:[%s224 + $0x330] sm:$0xff]
        %v383 = vld [vmem:[%s224 + $0x338] sm:$0xff]
        %v384 = vld [vmem:[%s224 + $0x340] sm:$0xff]
        %v385 = vld [vmem:[%s224 + $0x348] sm:$0xff]
        %v386 = vld [vmem:[%s224 + $0x350] sm:$0xff]
        %v387 = vld [vmem:[%s224 + $0x358] sm:$0xff]
        %v388 = vld [vmem:[%s224 + $0x360] sm:$0xff]
        %v389 = vld [vmem:[%s224 + $0x368] sm:$0xff]
        %v390 = vld [vmem:[%s224 + $0x370] sm:$0xff]
        %v391 = vld [vmem:[%s224 + $0x378] sm:$0xff]
        %v392 = vld [vmem:[%s224 + $0x380] sm:$0xff]
        %v393 = vld [vmem:[%s224 + $0x388] sm:$0xff]
        %v394 = vld [vmem:[%s224 + $0x390] sm:$0xff]
        %v395 = vld [vmem:[%s224 + $0x398] sm:$0xff]
        %v396 = vld [vmem:[%s224 + $0x3a0] sm:$0xff]
        %v397 = vld [vmem:[%s224 + $0x3a8] sm:$0xff]
        %v398 = vld [vmem:[%s224 + $0x3b0] sm:$0xff]
        %v399 = vld [vmem:[%s224 + $0x3b8] sm:$0xff]
        %v400 = vld [vmem:[%s224 + $0x3c0] sm:$0xff]
        %v401 = vld [vmem:[%s224 + $0x3c8] sm:$0xff]
        %v402 = vld [vmem:[%s224 + $0x3d0] sm:$0xff]
        %v403 = vld [vmem:[%s224 + $0x3d8] sm:$0xff]
        %v404 = vld [vmem:[%s224 + $0x3e0] sm:$0xff]
        %v405 = vld [vmem:[%s224 + $0x3e8] sm:$0xff]
        %v406 = vld [vmem:[%s224 + $0x3f0] sm:$0xff]
        %v407 = vld [vmem:[%s224 + $0x3f8] sm:$0xff]
        %v408 = vld [vmem:[%s224 + $0x400] sm:$0xff]
        %v409 = vld [vmem:[%s224 + $0x408] sm:$0xff]
        %v410 = vld [vmem:[%s224 + $0x410] sm:$0xff]
        %v411 = vld [vmem:[%s224 + $0x418] sm:$0xff]
        %v412 = vld [vmem:[%s224 + $0x420] sm:$0xff]
        %v413 = vld [vmem:[%s224 + $0x428] sm:$0xff]
        %v414 = vld [vmem:[%s224 + $0x430] sm:$0xff]
        %v415 = vld [vmem:[%s224 + $0x438] sm:$0xff]
        %v416 = vld [vmem:[%s224 + $0x440] sm:$0xff]
        %v417 = vld [vmem:[%s224 + $0x448] sm:$0xff]
        %v418 = vld [vmem:[%s224 + $0x450] sm:$0xff]
        %v419 = vld [vmem:[%s224 + $0x458] sm:$0xff]
        %v420 = vld [vmem:[%s224 + $0x460] sm:$0xff]
        %v421 = vld [vmem:[%s224 + $0x468] sm:$0xff]
        %v422 = vld [vmem:[%s224 + $0x470] sm:$0xff]
        %v423 = vld [vmem:[%s224 + $0x478] sm:$0xff]
        %v424 = vld [vmem:[%s224 + $0x480] sm:$0xff]
        %v425 = vld [vmem:[%s224 + $0x488] sm:$0xff]
        %v426 = vld [vmem:[%s224 + $0x490] sm:$0xff]
        %v427 = vld [vmem:[%s224 + $0x498] sm:$0xff]
        %v428 = vld [vmem:[%s224 + $0x4a0] sm:$0xff]
        %v429 = vld [vmem:[%s224 + $0x4a8] sm:$0xff]
        %v430 = vld [vmem:[%s224 + $0x4b0] sm:$0xff]
        %v431 = vld [vmem:[%s224 + $0x4b8] sm:$0xff]
        %v432 = vld [vmem:[%s224 + $0x4c0] sm:$0xff]
        %v433 = vld [vmem:[%s224 + $0x4c8] sm:$0xff]
        %v434 = vld [vmem:[%s224 + $0x4d0] sm:$0xff]
        %v435 = vld [vmem:[%s224 + $0x4d8] sm:$0xff]
        %v436 = vld [vmem:[%s224 + $0x4e0] sm:$0xff]
        %v437 = vld [vmem:[%s224 + $0x4e8] sm:$0xff]
        %v438 = vld [vmem:[%s224 + $0x4f0] sm:$0xff]
        %v439 = vld [vmem:[%s224 + $0x4f8] sm:$0xff]
        %v440 = vld [vmem:[%s224 + $0x500] sm:$0xff]
        %v441 = vld [vmem:[%s224 + $0x508] sm:$0xff]
        %v442 = vld [vmem:[%s224 + $0x510] sm:$0xff]
        %v443 = vld [vmem:[%s224 + $0x518] sm:$0xff]
        %v444 = vld [vmem:[%s224 + $0x520] sm:$0xff]
        %v445 = vld [vmem:[%s224 + $0x528] sm:$0xff]
        %v446 = vld [vmem:[%s224 + $0x530] sm:$0xff]
        %v447 = vld [vmem:[%s224 + $0x538] sm:$0xff]
        %v448 = vld [vmem:[%s224 + $0x540] sm:$0xff]
        %v449 = vld [vmem:[%s224 + $0x548] sm:$0xff]
        %v450 = vld [vmem:[%s224 + $0x550] sm:$0xff]
        %v451 = vld [vmem:[%s224 + $0x558] sm:$0xff]
        %v452 = vld [vmem:[%s224 + $0x560] sm:$0xff]
        %v453 = vld [vmem:[%s224 + $0x568] sm:$0xff]
        %v454 = vld [vmem:[%s224 + $0x570] sm:$0xff]
        %v455 = vld [vmem:[%s224 + $0x578] sm:$0xff]
        %v456 = vld [vmem:[%s224 + $0x580] sm:$0xff]
        %v457 = vld [vmem:[%s224 + $0x588] sm:$0xff]
        %v458 = vld [vmem:[%s224 + $0x590] sm:$0xff]
        %v459 = vld [vmem:[%s224 + $0x598] sm:$0xff]
        %v460 = vld [vmem:[%s224 + $0x5a0] sm:$0xff]
        %v461 = vld [vmem:[%s224 + $0x5a8] sm:$0xff]
        %v462 = vld [vmem:[%s224 + $0x5b0] sm:$0xff]
        %v463 = vld [vmem:[%s224 + $0x5b8] sm:$0xff]
        %v464 = vld [vmem:[%s224 + $0x5c0] sm:$0xff]
        %v465 = vld [vmem:[%s224 + $0x5c8] sm:$0xff]
        %v466 = vld [vmem:[%s224 + $0x5d0] sm:$0xff]
        %v467 = vld [vmem:[%s224 + $0x5d8] sm:$0xff]
        %v468 = vld [vmem:[%s224 + $0x5e0] sm:$0xff]
        %v469 = vld [vmem:[%s224 + $0x5e8] sm:$0xff]
        %v470 = vld [vmem:[%s224 + $0x5f0] sm:$0xff]
        %v471 = vld [vmem:[%s224 + $0x5f8] sm:$0xff]
        %v472 = vld [vmem:[%s224 + $0x600] sm:$0xff]
        %v473 = vld [vmem:[%s224 + $0x608] sm:$0xff]
        %v474 = vld [vmem:[%s224 + $0x610] sm:$0xff]
        %v475 = vld [vmem:[%s224 + $0x618] sm:$0xff]
        %v476 = vld [vmem:[%s224 + $0x620] sm:$0xff]
        %v477 = vld [vmem:[%s224 + $0x628] sm:$0xff]
        %v478 = vld [vmem:[%s224 + $0x630] sm:$0xff]
        %v479 = vld [vmem:[%s224 + $0x638] sm:$0xff]
        %v480 = vld [vmem:[%s224 + $0x640] sm:$0xff]
        %v481 = vld [vmem:[%s224 + $0x648] sm:$0xff]
        %v482 = vld [vmem:[%s224 + $0x650] sm:$0xff]
        %v483 = vld [vmem:[%s224 + $0x658] sm:$0xff]
        %v484 = vld [vmem:[%s224 + $0x660] sm:$0xff]
        %v485 = vld [vmem:[%s224 + $0x668] sm:$0xff]
        %v486 = vld [vmem:[%s224 + $0x670] sm:$0xff]
        %v487 = vld [vmem:[%s224 + $0x678] sm:$0xff]
        %v488 = vld [vmem:[%s224 + $0x680] sm:$0xff]
        %v489 = vld [vmem:[%s224 + $0x688] sm:$0xff]
        %v490 = vld [vmem:[%s224 + $0x690] sm:$0xff]
        %v491 = vld [vmem:[%s224 + $0x698] sm:$0xff]
        %v492 = vld [vmem:[%s224 + $0x6a0] sm:$0xff]
        %v493 = vld [vmem:[%s224 + $0x6a8] sm:$0xff]
        %v494 = vld [vmem:[%s224 + $0x6b0] sm:$0xff]
        %v495 = vld [vmem:[%s224 + $0x6b8] sm:$0xff]
        %v496 = vld [vmem:[%s224 + $0x6c0] sm:$0xff]
        %v497 = vld [vmem:[%s224 + $0x6c8] sm:$0xff]
        %v498 = vld [vmem:[%s224 + $0x6d0] sm:$0xff]
        %v499 = vld [vmem:[%s224 + $0x6d8] sm:$0xff]
        %v500 = vld [vmem:[%s224 + $0x6e0] sm:$0xff]
        %v501 = vld [vmem:[%s224 + $0x6e8] sm:$0xff]
        %v502 = vld [vmem:[%s224 + $0x6f0] sm:$0xff]
        %v503 = vld [vmem:[%s224 + $0x6f8] sm:$0xff]
        %v504 = vld [vmem:[%s224 + $0x700] sm:$0xff]
        %v505 = vld [vmem:[%s224 + $0x708] sm:$0xff]
        %v506 = vld [vmem:[%s224 + $0x710] sm:$0xff]
        %v507 = vld [vmem:[%s224 + $0x718] sm:$0xff]
        %v508 = vld [vmem:[%s224 + $0x720] sm:$0xff]
        %v509 = vld [vmem:[%s224 + $0x728] sm:$0xff]
        %v510 = vld [vmem:[%s224 + $0x730] sm:$0xff]
        %v511 = vld [vmem:[%s224 + $0x738] sm:$0xff]
        %v512 = vld [vmem:[%s224 + $0x740] sm:$0xff]
        %v513 = vld [vmem:[%s224 + $0x748] sm:$0xff]
        %v514 = vld [vmem:[%s224 + $0x750] sm:$0xff]
        %v515 = vld [vmem:[%s224 + $0x758] sm:$0xff]
        %v516 = vld [vmem:[%s224 + $0x760] sm:$0xff]
        %v517 = vld [vmem:[%s224 + $0x768] sm:$0xff]
        %v518 = vld [vmem:[%s224 + $0x770] sm:$0xff]
        %v519 = vld [vmem:[%s224 + $0x778] sm:$0xff]
        %v520 = vld [vmem:[%s224 + $0x780] sm:$0xff]
        %v521 = vld [vmem:[%s224 + $0x788] sm:$0xff]
        %v522 = vld [vmem:[%s224 + $0x790] sm:$0xff]
        %v523 = vld [vmem:[%s224 + $0x798] sm:$0xff]
        %v524 = vld [vmem:[%s224 + $0x7a0] sm:$0xff]
        %v525 = vld [vmem:[%s224 + $0x7a8] sm:$0xff]
        %v526 = vld [vmem:[%s224 + $0x7b0] sm:$0xff]
        %v527 = vld [vmem:[%s224 + $0x7b8] sm:$0xff]
        %v528 = vld [vmem:[%s224 + $0x7c0] sm:$0xff]
        %v529 = vld [vmem:[%s224 + $0x7c8] sm:$0xff]
        %v530 = vld [vmem:[%s224 + $0x7d0] sm:$0xff]
        %v531 = vld [vmem:[%s224 + $0x7d8] sm:$0xff]
        %v532 = vld [vmem:[%s224 + $0x7e0] sm:$0xff]
        %v533 = vld [vmem:[%s224 + $0x7e8] sm:$0xff]
        %v534 = vld [vmem:[%s224 + $0x7f0] sm:$0xff]
        %v535 = vld [vmem:[%s224 + $0x7f8] sm:$0xff]
        %536 = vmatprep.subr.mxu0 %v281
        %537 = vmatpush1.msra.mxu0 %v280
        %538 = vmatprep.subr.mxu0 %v289
        %539 = vmatpush1.msra.mxu0 %v288
        %540 = vmatprep.subr.mxu0 %v297
        %541 = vmatpush1.msra.mxu0 %v296
        %542 = vmatprep.subr.mxu0 %v305
        %543 = vmatpush1.msra.mxu0 %v304
        %544 = vmatprep.subr.mxu0 %v313
        %545 = vmatpush1.msra.mxu0 %v312
        %546 = vmatprep.subr.mxu0 %v321
        %547 = vmatpush1.msra.mxu0 %v320
        %548 = vmatprep.subr.mxu0 %v329
        %549 = vmatpush1.msra.mxu0 %v328
        %550 = vmatprep.subr.mxu0 %v337
        %551 = vmatpush1.msra.mxu0 %v336
        %552 = vmatprep.subr.mxu0 %v345
        %553 = vmatpush1.msra.mxu0 %v344
        %554 = vmatprep.subr.mxu0 %v353
        %555 = vmatpush1.msra.mxu0 %v352
        %556 = vmatprep.subr.mxu0 %v361
        %557 = vmatpush1.msra.mxu0 %v360
        %558 = vmatprep.subr.mxu0 %v369
        %559 = vmatpush1.msra.mxu0 %v368
        %560 = vmatprep.subr.mxu0 %v377
        %561 = vmatpush1.msra.mxu0 %v376
        %562 = vmatprep.subr.mxu0 %v385
        %563 = vmatpush1.msra.mxu0 %v384
        %564 = vmatprep.subr.mxu0 %v393
        %565 = vmatpush1.msra.mxu0 %v392
        %566 = vmatprep.subr.mxu0 %v401
        %567 = vmatpush1.msra.mxu0 %v400
        %568 = vmatprep.subr.mxu0 %v409
        %569 = vmatpush1.msra.mxu0 %v408
        %570 = vmatprep.subr.mxu0 %v417
        %571 = vmatpush1.msra.mxu0 %v416
        %572 = vmatprep.subr.mxu0 %v425
        %573 = vmatpush1.msra.mxu0 %v424
        %574 = vmatprep.subr.mxu0 %v433
        %575 = vmatpush1.msra.mxu0 %v432
        %576 = vmatprep.subr.mxu0 %v441
        %577 = vmatpush1.msra.mxu0 %v440
        %578 = vmatprep.subr.mxu0 %v449
        %579 = vmatpush1.msra.mxu0 %v448
        %580 = vmatprep.subr.mxu0 %v457
        %581 = vmatpush1.msra.mxu0 %v456
        %582 = vmatprep.subr.mxu0 %v465
        %583 = vmatpush1.msra.mxu0 %v464
        %584 = vmatprep.subr.mxu0 %v473
        %585 = vmatpush1.msra.mxu0 %v472
        %586 = vmatprep.subr.mxu0 %v481
        %587 = vmatpush1.msra.mxu0 %v480
        %588 = vmatprep.subr.mxu0 %v489
        %589 = vmatpush1.msra.mxu0 %v488
        %590 = vmatprep.subr.mxu0 %v497
        %591 = vmatpush1.msra.mxu0 %v496
        %592 = vmatprep.subr.mxu0 %v505
        %593 = vmatpush1.msra.mxu0 %v504
        %594 = vmatprep.subr.mxu0 %v513
        %595 = vmatpush1.msra.mxu0 %v512
        %596 = vmatprep.subr.mxu0 %v521
        %597 = vmatpush1.msra.mxu0 %v520
        %598 = vmatprep.subr.mxu0 %v529
        %599 = vmatpush1.msra.mxu0 %v528
        %600 = vmatprep.mubr.f32.mxu0 %v273
        %601 = vmatmul.mubr.f32.gmra.mrb[0].mxu0 %v272
        %v602 = vpop.f32.mrb[0].mxu0
        %v603 = vadd.f32 0.0, %v602
        %v604 = vpop.f32.mrb[0].mxu0
        %v605 = vadd.f32 0.0, %v604
        %606 = vmatprep.mubr.f32.mxu0 %v275
        %607 = vmatmul.mubr.f32.gmra.mrb[0].mxu0 %v274
        %v608 = vpop.f32.mrb[0].mxu0
        %v609 = vadd.f32 0.0, %v608
        %v610 = vpop.f32.mrb[0].mxu0
        %v611 = vadd.f32 0.0, %v610
        %612 = vmatprep.mubr.f32.mxu0 %v277
        %613 = vmatmul.mubr.f32.gmra.mrb[0].mxu0 %v276
        %v614 = vpop.f32.mrb[0].mxu0
        %v615 = vadd.f32 0.0, %v614
        %v616 = vpop.f32.mrb[0].mxu0
        %v617 = vadd.f32 0.0, %v616
        %618 = vmatprep.mubr.f32.mxu0 %v279
        %619 = vmatmul.mubr.f32.gmra.mrb[0].mxu0 %v278
        %v620 = vpop.f32.mrb[0].mxu0
        %v621 = vadd.f32 0.0, %v620
        %v622 = vpop.f32.mrb[0].mxu0
        %v623 = vadd.f32 0.0, %v622
        %624 = vdwg.mxu0
        %625 = vmatprep.subr.mxu0 %v283
        %626 = vmatpush1.msra.mxu0 %v282
        %627 = vmatprep.subr.mxu0 %v291
        %628 = vmatpush1.msra.mxu0 %v290
        %629 = vmatprep.subr.mxu0 %v299
        %630 = vmatpush1.msra.mxu0 %v298
        %631 = vmatprep.subr.mxu0 %v307
        %632 = vmatpush1.msra.mxu0 %v306
        %633 = vmatprep.subr.mxu0 %v315
        %634 = vmatpush1.msra.mxu0 %v314
        %635 = vmatprep.subr.mxu0 %v323
        %636 = vmatpush1.msra.mxu0 %v322
        %637 = vmatprep.subr.mxu0 %v331
        %638 = vmatpush1.msra.mxu0 %v330
        %639 = vmatprep.subr.mxu0 %v339
        %640 = vmatpush1.msra.mxu0 %v338
        %641 = vmatprep.subr.mxu0 %v347
        %642 = vmatpush1.msra.mxu0 %v346
        %643 = vmatprep.subr.mxu0 %v355
        %644 = vmatpush1.msra.mxu0 %v354
        %645 = vmatprep.subr.mxu0 %v363
        %646 = vmatpush1.msra.mxu0 %v362
        %647 = vmatprep.subr.mxu0 %v371
        %648 = vmatpush1.msra.mxu0 %v370
        %649 = vmatprep.subr.mxu0 %v379
        %650 = vmatpush1.msra.mxu0 %v378
        %651 = vmatprep.subr.mxu0 %v387
        %652 = vmatpush1.msra.mxu0 %v386
        %653 = vmatprep.subr.mxu0 %v395
        %654 = vmatpush1.msra.mxu0 %v394
        %655 = vmatprep.subr.mxu0 %v403
        %656 = vmatpush1.msra.mxu0 %v402
        %657 = vmatprep.subr.mxu0 %v411
        %658 = vmatpush1.msra.mxu0 %v410
        %659 = vmatprep.subr.mxu0 %v419
        %660 = vmatpush1.msra.mxu0 %v418
        %661 = vmatprep.subr.mxu0 %v427
        %662 = vmatpush1.msra.mxu0 %v426
        %663 = vmatprep.subr.mxu0 %v435
        %664 = vmatpush1.msra.mxu0 %v434
        %665 = vmatprep.subr.mxu0 %v443
        %666 = vmatpush1.msra.mxu0 %v442
        %667 = vmatprep.subr.mxu0 %v451
        %668 = vmatpush1.msra.mxu0 %v450
        %669 = vmatprep.subr.mxu0 %v459
        %670 = vmatpush1.msra.mxu0 %v458
        %671 = vmatprep.subr.mxu0 %v467
        %672 = vmatpush1.msra.mxu0 %v466
        %673 = vmatprep.subr.mxu0 %v475
        %674 = vmatpush1.msra.mxu0 %v474
        %675 = vmatprep.subr.mxu0 %v483
        %676 = vmatpush1.msra.mxu0 %v482
        %677 = vmatprep.subr.mxu0 %v491
        %678 = vmatpush1.msra.mxu0 %v490
        %679 = vmatprep.subr.mxu0 %v499
        %680 = vmatpush1.msra.mxu0 %v498
        %681 = vmatprep.subr.mxu0 %v507
        %682 = vmatpush1.msra.mxu0 %v506
        %683 = vmatprep.subr.mxu0 %v515
        %684 = vmatpush1.msra.mxu0 %v514
        %685 = vmatprep.subr.mxu0 %v523
        %686 = vmatpush1.msra.mxu0 %v522
        %687 = vmatprep.subr.mxu0 %v531
        %688 = vmatpush1.msra.mxu0 %v530
        %689 = vmatprep.mubr.f32.mxu0 %v273
        %690 = vmatmul.mubr.f32.gmra.mrb[0].mxu0 %v272
        %v691 = vpop.f32.mrb[0].mxu0
        %v692 = vadd.f32 0.0, %v691
        %v693 = vpop.f32.mrb[0].mxu0
        %v694 = vadd.f32 0.0, %v693
        %695 = vmatprep.mubr.f32.mxu0 %v275
        %696 = vmatmul.mubr.f32.gmra.mrb[0].mxu0 %v274
        %v697 = vpop.f32.mrb[0].mxu0
        %v698 = vadd.f32 0.0, %v697
        %v699 = vpop.f32.mrb[0].mxu0
        %v700 = vadd.f32 0.0, %v699
        %701 = vmatprep.mubr.f32.mxu0 %v277
        %702 = vmatmul.mubr.f32.gmra.mrb[0].mxu0 %v276
        %v703 = vpop.f32.mrb[0].mxu0
        %v704 = vadd.f32 0.0, %v703
        %v705 = vpop.f32.mrb[0].mxu0
        %v706 = vadd.f32 0.0, %v705
        %707 = vmatprep.mubr.f32.mxu0 %v279
        %708 = vmatmul.mubr.f32.gmra.mrb[0].mxu0 %v278
        %v709 = vpop.f32.mrb[0].mxu0
        %v710 = vadd.f32 0.0, %v709
        %v711 = vpop.f32.mrb[0].mxu0
        %v712 = vadd.f32 0.0, %v711
        %713 = vdwg.mxu0
        %714 = vmatprep.subr.mxu0 %v285
        %715 = vmatpush1.msra.mxu0 %v284
        %716 = vmatprep.subr.mxu0 %v293
        %717 = vmatpush1.msra.mxu0 %v292
        %718 = vmatprep.subr.mxu0 %v301
        %719 = vmatpush1.msra.mxu0 %v300
        %720 = vmatprep.subr.mxu0 %v309
        %721 = vmatpush1.msra.mxu0 %v308
        %722 = vmatprep.subr.mxu0 %v317
        %723 = vmatpush1.msra.mxu0 %v316
        %724 = vmatprep.subr.mxu0 %v325
        %725 = vmatpush1.msra.mxu0 %v324
        %726 = vmatprep.subr.mxu0 %v333
        %727 = vmatpush1.msra.mxu0 %v332
        %728 = vmatprep.subr.mxu0 %v341
        %729 = vmatpush1.msra.mxu0 %v340
        %730 = vmatprep.subr.mxu0 %v349
        %731 = vmatpush1.msra.mxu0 %v348
        %732 = vmatprep.subr.mxu0 %v357
        %733 = vmatpush1.msra.mxu0 %v356
        %734 = vmatprep.subr.mxu0 %v365
        %735 = vmatpush1.msra.mxu0 %v364
        %736 = vmatprep.subr.mxu0 %v373
        %737 = vmatpush1.msra.mxu0 %v372
        %738 = vmatprep.subr.mxu0 %v381
        %739 = vmatpush1.msra.mxu0 %v380
        %740 = vmatprep.subr.mxu0 %v389
        %741 = vmatpush1.msra.mxu0 %v388
        %742 = vmatprep.subr.mxu0 %v397
        %743 = vmatpush1.msra.mxu0 %v396
        %744 = vmatprep.subr.mxu0 %v405
        %745 = vmatpush1.msra.mxu0 %v404
        %746 = vmatprep.subr.mxu0 %v413
        %747 = vmatpush1.msra.mxu0 %v412
        %748 = vmatprep.subr.mxu0 %v421
        %749 = vmatpush1.msra.mxu0 %v420
        %750 = vmatprep.subr.mxu0 %v429
        %751 = vmatpush1.msra.mxu0 %v428
        %752 = vmatprep.subr.mxu0 %v437
        %753 = vmatpush1.msra.mxu0 %v436
        %754 = vmatprep.subr.mxu0 %v445
        %755 = vmatpush1.msra.mxu0 %v444
        %756 = vmatprep.subr.mxu0 %v453
        %757 = vmatpush1.msra.mxu0 %v452
        %758 = vmatprep.subr.mxu0 %v461
        %759 = vmatpush1.msra.mxu0 %v460
        %760 = vmatprep.subr.mxu0 %v469
        %761 = vmatpush1.msra.mxu0 %v468
        %762 = vmatprep.subr.mxu0 %v477
        %763 = vmatpush1.msra.mxu0 %v476
        %764 = vmatprep.subr.mxu0 %v485
        %765 = vmatpush1.msra.mxu0 %v484
        %766 = vmatprep.subr.mxu0 %v493
        %767 = vmatpush1.msra.mxu0 %v492
        %768 = vmatprep.subr.mxu0 %v501
        %769 = vmatpush1.msra.mxu0 %v500
        %770 = vmatprep.subr.mxu0 %v509
        %771 = vmatpush1.msra.mxu0 %v508
        %772 = vmatprep.subr.mxu0 %v517
        %773 = vmatpush1.msra.mxu0 %v516
        %774 = vmatprep.subr.mxu0 %v525
        %775 = vmatpush1.msra.mxu0 %v524
        %776 = vmatprep.subr.mxu0 %v533
        %777 = vmatpush1.msra.mxu0 %v532
        %778 = vmatprep.mubr.f32.mxu0 %v273
        %779 = vmatmul.mubr.f32.gmra.mrb[0].mxu0 %v272
        %v780 = vpop.f32.mrb[0].mxu0
        %v781 = vadd.f32 0.0, %v780
        %v782 = vpop.f32.mrb[0].mxu0
        %v783 = vadd.f32 0.0, %v782
        %784 = vmatprep.mubr.f32.mxu0 %v275
        %785 = vmatmul.mubr.f32.gmra.mrb[0].mxu0 %v274
        %v786 = vpop.f32.mrb[0].mxu0
        %v787 = vadd.f32 0.0, %v786
        %v788 = vpop.f32.mrb[0].mxu0
        %v789 = vadd.f32 0.0, %v788
        %790 = vmatprep.mubr.f32.mxu0 %v277
        %791 = vmatmul.mubr.f32.gmra.mrb[0].mxu0 %v276
        %v792 = vpop.f32.mrb[0].mxu0
        %v793 = vadd.f32 0.0, %v792
        %v794 = vpop.f32.mrb[0].mxu0
        %v795 = vadd.f32 0.0, %v794
        %796 = vmatprep.mubr.f32.mxu0 %v279
        %797 = vmatmul.mubr.f32.gmra.mrb[0].mxu0 %v278
        %v798 = vpop.f32.mrb[0].mxu0
        %v799 = vadd.f32 0.0, %v798
        %v800 = vpop.f32.mrb[0].mxu0
        %v801 = vadd.f32 0.0, %v800
        %802 = vdwg.mxu0
        %803 = vmatprep.subr.mxu0 %v287
        %804 = vmatpush1.msra.mxu0 %v286
        %805 = vmatprep.subr.mxu0 %v295
        %806 = vmatpush1.msra.mxu0 %v294
        %807 = vmatprep.subr.mxu0 %v303
        %808 = vmatpush1.msra.mxu0 %v302
        %809 = vmatprep.subr.mxu0 %v311
        %810 = vmatpush1.msra.mxu0 %v310
        %811 = vmatprep.subr.mxu0 %v319
        %812 = vmatpush1.msra.mxu0 %v318
        %813 = vmatprep.subr.mxu0 %v327
        %814 = vmatpush1.msra.mxu0 %v326
        %815 = vmatprep.subr.mxu0 %v335
        %816 = vmatpush1.msra.mxu0 %v334
        %817 = vmatprep.subr.mxu0 %v343
        %818 = vmatpush1.msra.mxu0 %v342
        %819 = vmatprep.subr.mxu0 %v351
        %820 = vmatpush1.msra.mxu0 %v350
        %821 = vmatprep.subr.mxu0 %v359
        %822 = vmatpush1.msra.mxu0 %v358
        %823 = vmatprep.subr.mxu0 %v367
        %824 = vmatpush1.msra.mxu0 %v366
        %825 = vmatprep.subr.mxu0 %v375
        %826 = vmatpush1.msra.mxu0 %v374
        %827 = vmatprep.subr.mxu0 %v383
        %828 = vmatpush1.msra.mxu0 %v382
        %829 = vmatprep.subr.mxu0 %v391
        %830 = vmatpush1.msra.mxu0 %v390
        %831 = vmatprep.subr.mxu0 %v399
        %832 = vmatpush1.msra.mxu0 %v398
        %833 = vmatprep.subr.mxu0 %v407
        %834 = vmatpush1.msra.mxu0 %v406
        %835 = vmatprep.subr.mxu0 %v415
        %836 = vmatpush1.msra.mxu0 %v414
        %837 = vmatprep.subr.mxu0 %v423
        %838 = vmatpush1.msra.mxu0 %v422
        %839 = vmatprep.subr.mxu0 %v431
        %840 = vmatpush1.msra.mxu0 %v430
        %841 = vmatprep.subr.mxu0 %v439
        %842 = vmatpush1.msra.mxu0 %v438
        %843 = vmatprep.subr.mxu0 %v447
        %844 = vmatpush1.msra.mxu0 %v446
        %845 = vmatprep.subr.mxu0 %v455
        %846 = vmatpush1.msra.mxu0 %v454
        %847 = vmatprep.subr.mxu0 %v463
        %848 = vmatpush1.msra.mxu0 %v462
        %849 = vmatprep.subr.mxu0 %v471
        %850 = vmatpush1.msra.mxu0 %v470
        %851 = vmatprep.subr.mxu0 %v479
        %852 = vmatpush1.msra.mxu0 %v478
        %853 = vmatprep.subr.mxu0 %v487
        %854 = vmatpush1.msra.mxu0 %v486
        %855 = vmatprep.subr.mxu0 %v495
        %856 = vmatpush1.msra.mxu0 %v494
        %857 = vmatprep.subr.mxu0 %v503
        %858 = vmatpush1.msra.mxu0 %v502
        %859 = vmatprep.subr.mxu0 %v511
        %860 = vmatpush1.msra.mxu0 %v510
        %861 = vmatprep.subr.mxu0 %v519
        %862 = vmatpush1.msra.mxu0 %v518
        %863 = vmatprep.subr.mxu0 %v527
        %864 = vmatpush1.msra.mxu0 %v526
        %865 = vmatprep.subr.mxu0 %v535
        %866 = vmatpush1.msra.mxu0 %v534
        %867 = vmatprep.mubr.f32.mxu0 %v273
        %868 = vmatmul.mubr.f32.gmra.mrb[0].mxu0 %v272
        %v869 = vpop.f32.mrb[0].mxu0
        %v870 = vadd.f32 0.0, %v869
        %v871 = vpop.f32.mrb[0].mxu0
        %v872 = vadd.f32 0.0, %v871
        %873 = vmatprep.mubr.f32.mxu0 %v275
        %874 = vmatmul.mubr.f32.gmra.mrb[0].mxu0 %v274
        %v875 = vpop.f32.mrb[0].mxu0
        %v876 = vadd.f32 0.0, %v875
        %v877 = vpop.f32.mrb[0].mxu0
        %v878 = vadd.f32 0.0, %v877
        %879 = vmatprep.mubr.f32.mxu0 %v277
        %880 = vmatmul.mubr.f32.gmra.mrb[0].mxu0 %v276
        %v881 = vpop.f32.mrb[0].mxu0
        %v882 = vadd.f32 0.0, %v881
        %v883 = vpop.f32.mrb[0].mxu0
        %v884 = vadd.f32 0.0, %v883
        %885 = vmatprep.mubr.f32.mxu0 %v279
        %886 = vmatmul.mubr.f32.gmra.mrb[0].mxu0 %v278
        %v887 = vpop.f32.mrb[0].mxu0
        %v888 = vadd.f32 0.0, %v887
        %v889 = vpop.f32.mrb[0].mxu0
        %v890 = vadd.f32 0.0, %v889
        %891 = vdwg.mxu0
        %v892 = vxor.u32 %v603, 2147483648
        %v893 = vxor.u32 %v605, 2147483648
        %v894 = vxor.u32 %v692, 2147483648
        %v895 = vxor.u32 %v694, 2147483648
        %v896 = vxor.u32 %v609, 2147483648
        %v897 = vxor.u32 %v611, 2147483648
        %v898 = vxor.u32 %v698, 2147483648
        %v899 = vxor.u32 %v700, 2147483648
        %v900 = vxor.u32 %v615, 2147483648
        %v901 = vxor.u32 %v617, 2147483648
        %v902 = vxor.u32 %v704, 2147483648
        %v903 = vxor.u32 %v706, 2147483648
        %v904 = vxor.u32 %v621, 2147483648
        %v905 = vxor.u32 %v623, 2147483648
        %v906 = vxor.u32 %v710, 2147483648
        %v907 = vxor.u32 %v712, 2147483648
        %v908 = vmul.f32 %v892, 1.442695
        %v909 = vpow.pop %v908
        %v910 = vmul.f32 %v893, 1.442695
        %v911 = vpow.pop %v910
        %v912 = vmul.f32 %v894, 1.442695
        %v913 = vpow.pop %v912
        %v914 = vmul.f32 %v895, 1.442695
        %v915 = vpow.pop %v914
        %v916 = vmul.f32 %v896, 1.442695
        %v917 = vpow.pop %v916
        %v918 = vmul.f32 %v897, 1.442695
        %v919 = vpow.pop %v918
        %v920 = vmul.f32 %v898, 1.442695
        %v921 = vpow.pop %v920
        %v922 = vmul.f32 %v899, 1.442695
        %v923 = vpow.pop %v922
        %v924 = vmul.f32 %v900, 1.442695
        %v925 = vpow.pop %v924
        %v926 = vmul.f32 %v901, 1.442695
        %v927 = vpow.pop %v926
        %v928 = vmul.f32 %v902, 1.442695
        %v929 = vpow.pop %v928
        %v930 = vmul.f32 %v903, 1.442695
        %v931 = vpow.pop %v930
        %v932 = vmul.f32 %v904, 1.442695
        %v933 = vpow.pop %v932
        %v934 = vmul.f32 %v905, 1.442695
        %v935 = vpow.pop %v934
        %v936 = vmul.f32 %v906, 1.442695
        %v937 = vpow.pop %v936
        %v938 = vmul.f32 %v907, 1.442695
        %v939 = vpow.pop %v938
        %v940 = vadd.f32 %v909, 1.0
        %v941 = vadd.f32 %v911, 1.0
        %v942 = vadd.f32 %v913, 1.0
        %v943 = vadd.f32 %v915, 1.0
        %v944 = vadd.f32 %v917, 1.0
        %v945 = vadd.f32 %v919, 1.0
        %v946 = vadd.f32 %v921, 1.0
        %v947 = vadd.f32 %v923, 1.0
        %v948 = vadd.f32 %v925, 1.0
        %v949 = vadd.f32 %v927, 1.0
        %v950 = vadd.f32 %v929, 1.0
        %v951 = vadd.f32 %v931, 1.0
        %v952 = vadd.f32 %v933, 1.0
        %v953 = vadd.f32 %v935, 1.0
        %v954 = vadd.f32 %v937, 1.0
        %v955 = vadd.f32 %v939, 1.0
        %v956 = vrcp.pop %v940
        %v957 = vmul.f32 1.0, %v956
        %v958 = vrcp.pop %v941
        %v959 = vmul.f32 1.0, %v958
        %v960 = vrcp.pop %v942
        %v961 = vmul.f32 1.0, %v960
        %v962 = vrcp.pop %v943
        %v963 = vmul.f32 1.0, %v962
        %v964 = vrcp.pop %v944
        %v965 = vmul.f32 1.0, %v964
        %v966 = vrcp.pop %v945
        %v967 = vmul.f32 1.0, %v966
        %v968 = vrcp.pop %v946
        %v969 = vmul.f32 1.0, %v968
        %v970 = vrcp.pop %v947
        %v971 = vmul.f32 1.0, %v970
        %v972 = vrcp.pop %v948
        %v973 = vmul.f32 1.0, %v972
        %v974 = vrcp.pop %v949
        %v975 = vmul.f32 1.0, %v974
        %v976 = vrcp.pop %v950
        %v977 = vmul.f32 1.0, %v976
        %v978 = vrcp.pop %v951
        %v979 = vmul.f32 1.0, %v978
        %v980 = vrcp.pop %v952
        %v981 = vmul.f32 1.0, %v980
        %v982 = vrcp.pop %v953
        %v983 = vmul.f32 1.0, %v982
        %v984 = vrcp.pop %v954
        %v985 = vmul.f32 1.0, %v984
        %v986 = vrcp.pop %v955
        %v987 = vmul.f32 1.0, %v986
        %v988 = vmul.f32 %v603, %v957
        %v989 = vmul.f32 %v605, %v959
        %v990 = vmul.f32 %v692, %v961
        %v991 = vmul.f32 %v694, %v963
        %v992 = vmul.f32 %v609, %v965
        %v993 = vmul.f32 %v611, %v967
        %v994 = vmul.f32 %v698, %v969
        %v995 = vmul.f32 %v700, %v971
        %v996 = vmul.f32 %v615, %v973
        %v997 = vmul.f32 %v617, %v975
        %v998 = vmul.f32 %v704, %v977
        %v999 = vmul.f32 %v706, %v979
        %v1000 = vmul.f32 %v621, %v981
        %v1001 = vmul.f32 %v623, %v983
        %v1002 = vmul.f32 %v710, %v985
        %v1003 = vmul.f32 %v712, %v987
        %v1004 = vmul.f32 %v988, %v781
        %v1005 = vmul.f32 %v989, %v783
        %v1006 = vmul.f32 %v990, %v870
        %v1007 = vmul.f32 %v991, %v872
        %v1008 = vmul.f32 %v992, %v787
        %v1009 = vmul.f32 %v993, %v789
        %v1010 = vmul.f32 %v994, %v876
        %v1011 = vmul.f32 %v995, %v878
        %v1012 = vmul.f32 %v996, %v793
        %v1013 = vmul.f32 %v997, %v795
        %v1014 = vmul.f32 %v998, %v882
        %v1015 = vmul.f32 %v999, %v884
        %v1016 = vmul.f32 %v1000, %v799
        %v1017 = vmul.f32 %v1001, %v801
        %v1018 = vmul.f32 %v1002, %v888
        %v1019 = vmul.f32 %v1003, %v890
        %v1020 = vld [vmem:[#allocation2] sm:$0xff]
        %v1021 = vld [vmem:[#allocation2 + $0x8] sm:$0xff]
        %v1022 = vld [vmem:[#allocation2 + $0x10] sm:$0xff]
        %v1023 = vld [vmem:[#allocation2 + $0x18] sm:$0xff]
        %v1024 = vld [vmem:[#allocation2 + $0x20] sm:$0xff]
        %v1025 = vld [vmem:[#allocation2 + $0x28] sm:$0xff]
        %v1026 = vld [vmem:[#allocation2 + $0x30] sm:$0xff]
        %v1027 = vld [vmem:[#allocation2 + $0x38] sm:$0xff]
        %v1028 = vld [vmem:[%s233] sm:$0xff]
        %v1029 = vld [vmem:[%s233 + $0x8] sm:$0xff]
        %v1030 = vld [vmem:[%s233 + $0x10] sm:$0xff]
        %v1031 = vld [vmem:[%s233 + $0x18] sm:$0xff]
        %v1032 = vld [vmem:[%s233 + $0x20] sm:$0xff]
        %v1033 = vld [vmem:[%s233 + $0x28] sm:$0xff]
        %v1034 = vld [vmem:[%s233 + $0x30] sm:$0xff]
        %v1035 = vld [vmem:[%s233 + $0x38] sm:$0xff]
        %v1036 = vld [vmem:[%s233 + $0x40] sm:$0xff]
        %v1037 = vld [vmem:[%s233 + $0x48] sm:$0xff]
        %v1038 = vld [vmem:[%s233 + $0x50] sm:$0xff]
        %v1039 = vld [vmem:[%s233 + $0x58] sm:$0xff]
        %v1040 = vld [vmem:[%s233 + $0x60] sm:$0xff]
        %v1041 = vld [vmem:[%s233 + $0x68] sm:$0xff]
        %v1042 = vld [vmem:[%s233 + $0x70] sm:$0xff]
        %v1043 = vld [vmem:[%s233 + $0x78] sm:$0xff]
        %v1044 = vld [vmem:[%s233 + $0x80] sm:$0xff]
        %v1045 = vld [vmem:[%s233 + $0x88] sm:$0xff]
        %v1046 = vld [vmem:[%s233 + $0x90] sm:$0xff]
        %v1047 = vld [vmem:[%s233 + $0x98] sm:$0xff]
        %v1048 = vld [vmem:[%s233 + $0xa0] sm:$0xff]
        %v1049 = vld [vmem:[%s233 + $0xa8] sm:$0xff]
        %v1050 = vld [vmem:[%s233 + $0xb0] sm:$0xff]
        %v1051 = vld [vmem:[%s233 + $0xb8] sm:$0xff]
        %v1052 = vld [vmem:[%s233 + $0xc0] sm:$0xff]
        %v1053 = vld [vmem:[%s233 + $0xc8] sm:$0xff]
        %v1054 = vld [vmem:[%s233 + $0xd0] sm:$0xff]
        %v1055 = vld [vmem:[%s233 + $0xd8] sm:$0xff]
        %v1056 = vld [vmem:[%s233 + $0xe0] sm:$0xff]
        %v1057 = vld [vmem:[%s233 + $0xe8] sm:$0xff]
        %v1058 = vld [vmem:[%s233 + $0xf0] sm:$0xff]
        %v1059 = vld [vmem:[%s233 + $0xf8] sm:$0xff]
        %v1060 = vld [vmem:[%s233 + $0x100] sm:$0xff]
        %v1061 = vld [vmem:[%s233 + $0x108] sm:$0xff]
        %v1062 = vld [vmem:[%s233 + $0x110] sm:$0xff]
        %v1063 = vld [vmem:[%s233 + $0x118] sm:$0xff]
        %v1064 = vld [vmem:[%s233 + $0x120] sm:$0xff]
        %v1065 = vld [vmem:[%s233 + $0x128] sm:$0xff]
        %v1066 = vld [vmem:[%s233 + $0x130] sm:$0xff]
        %v1067 = vld [vmem:[%s233 + $0x138] sm:$0xff]
        %v1068 = vld [vmem:[%s233 + $0x140] sm:$0xff]
        %v1069 = vld [vmem:[%s233 + $0x148] sm:$0xff]
        %v1070 = vld [vmem:[%s233 + $0x150] sm:$0xff]
        %v1071 = vld [vmem:[%s233 + $0x158] sm:$0xff]
        %v1072 = vld [vmem:[%s233 + $0x160] sm:$0xff]
        %v1073 = vld [vmem:[%s233 + $0x168] sm:$0xff]
        %v1074 = vld [vmem:[%s233 + $0x170] sm:$0xff]
        %v1075 = vld [vmem:[%s233 + $0x178] sm:$0xff]
        %v1076 = vld [vmem:[%s233 + $0x180] sm:$0xff]
        %v1077 = vld [vmem:[%s233 + $0x188] sm:$0xff]
        %v1078 = vld [vmem:[%s233 + $0x190] sm:$0xff]
        %v1079 = vld [vmem:[%s233 + $0x198] sm:$0xff]
        %v1080 = vld [vmem:[%s233 + $0x1a0] sm:$0xff]
        %v1081 = vld [vmem:[%s233 + $0x1a8] sm:$0xff]
        %v1082 = vld [vmem:[%s233 + $0x1b0] sm:$0xff]
        %v1083 = vld [vmem:[%s233 + $0x1b8] sm:$0xff]
        %v1084 = vld [vmem:[%s233 + $0x1c0] sm:$0xff]
        %v1085 = vld [vmem:[%s233 + $0x1c8] sm:$0xff]
        %v1086 = vld [vmem:[%s233 + $0x1d0] sm:$0xff]
        %v1087 = vld [vmem:[%s233 + $0x1d8] sm:$0xff]
        %v1088 = vld [vmem:[%s233 + $0x1e0] sm:$0xff]
        %v1089 = vld [vmem:[%s233 + $0x1e8] sm:$0xff]
        %v1090 = vld [vmem:[%s233 + $0x1f0] sm:$0xff]
        %v1091 = vld [vmem:[%s233 + $0x1f8] sm:$0xff]
        %v1092 = vld [vmem:[%s233 + $0x200] sm:$0xff]
        %v1093 = vld [vmem:[%s233 + $0x208] sm:$0xff]
        %v1094 = vld [vmem:[%s233 + $0x210] sm:$0xff]
        %v1095 = vld [vmem:[%s233 + $0x218] sm:$0xff]
        %v1096 = vld [vmem:[%s233 + $0x220] sm:$0xff]
        %v1097 = vld [vmem:[%s233 + $0x228] sm:$0xff]
        %v1098 = vld [vmem:[%s233 + $0x230] sm:$0xff]
        %v1099 = vld [vmem:[%s233 + $0x238] sm:$0xff]
        %v1100 = vld [vmem:[%s233 + $0x240] sm:$0xff]
        %v1101 = vld [vmem:[%s233 + $0x248] sm:$0xff]
        %v1102 = vld [vmem:[%s233 + $0x250] sm:$0xff]
        %v1103 = vld [vmem:[%s233 + $0x258] sm:$0xff]
        %v1104 = vld [vmem:[%s233 + $0x260] sm:$0xff]
        %v1105 = vld [vmem:[%s233 + $0x268] sm:$0xff]
        %v1106 = vld [vmem:[%s233 + $0x270] sm:$0xff]
        %v1107 = vld [vmem:[%s233 + $0x278] sm:$0xff]
        %v1108 = vld [vmem:[%s233 + $0x280] sm:$0xff]
        %v1109 = vld [vmem:[%s233 + $0x288] sm:$0xff]
        %v1110 = vld [vmem:[%s233 + $0x290] sm:$0xff]
        %v1111 = vld [vmem:[%s233 + $0x298] sm:$0xff]
        %v1112 = vld [vmem:[%s233 + $0x2a0] sm:$0xff]
        %v1113 = vld [vmem:[%s233 + $0x2a8] sm:$0xff]
        %v1114 = vld [vmem:[%s233 + $0x2b0] sm:$0xff]
        %v1115 = vld [vmem:[%s233 + $0x2b8] sm:$0xff]
        %v1116 = vld [vmem:[%s233 + $0x2c0] sm:$0xff]
        %v1117 = vld [vmem:[%s233 + $0x2c8] sm:$0xff]
        %v1118 = vld [vmem:[%s233 + $0x2d0] sm:$0xff]
        %v1119 = vld [vmem:[%s233 + $0x2d8] sm:$0xff]
        %v1120 = vld [vmem:[%s233 + $0x2e0] sm:$0xff]
        %v1121 = vld [vmem:[%s233 + $0x2e8] sm:$0xff]
        %v1122 = vld [vmem:[%s233 + $0x2f0] sm:$0xff]
        %v1123 = vld [vmem:[%s233 + $0x2f8] sm:$0xff]
        %v1124 = vld [vmem:[%s233 + $0x300] sm:$0xff]
        %v1125 = vld [vmem:[%s233 + $0x308] sm:$0xff]
        %v1126 = vld [vmem:[%s233 + $0x310] sm:$0xff]
        %v1127 = vld [vmem:[%s233 + $0x318] sm:$0xff]
        %v1128 = vld [vmem:[%s233 + $0x320] sm:$0xff]
        %v1129 = vld [vmem:[%s233 + $0x328] sm:$0xff]
        %v1130 = vld [vmem:[%s233 + $0x330] sm:$0xff]
        %v1131 = vld [vmem:[%s233 + $0x338] sm:$0xff]
        %v1132 = vld [vmem:[%s233 + $0x340] sm:$0xff]
        %v1133 = vld [vmem:[%s233 + $0x348] sm:$0xff]
        %v1134 = vld [vmem:[%s233 + $0x350] sm:$0xff]
        %v1135 = vld [vmem:[%s233 + $0x358] sm:$0xff]
        %v1136 = vld [vmem:[%s233 + $0x360] sm:$0xff]
        %v1137 = vld [vmem:[%s233 + $0x368] sm:$0xff]
        %v1138 = vld [vmem:[%s233 + $0x370] sm:$0xff]
        %v1139 = vld [vmem:[%s233 + $0x378] sm:$0xff]
        %v1140 = vld [vmem:[%s233 + $0x380] sm:$0xff]
        %v1141 = vld [vmem:[%s233 + $0x388] sm:$0xff]
        %v1142 = vld [vmem:[%s233 + $0x390] sm:$0xff]
        %v1143 = vld [vmem:[%s233 + $0x398] sm:$0xff]
        %v1144 = vld [vmem:[%s233 + $0x3a0] sm:$0xff]
        %v1145 = vld [vmem:[%s233 + $0x3a8] sm:$0xff]
        %v1146 = vld [vmem:[%s233 + $0x3b0] sm:$0xff]
        %v1147 = vld [vmem:[%s233 + $0x3b8] sm:$0xff]
        %v1148 = vld [vmem:[%s233 + $0x3c0] sm:$0xff]
        %v1149 = vld [vmem:[%s233 + $0x3c8] sm:$0xff]
        %v1150 = vld [vmem:[%s233 + $0x3d0] sm:$0xff]
        %v1151 = vld [vmem:[%s233 + $0x3d8] sm:$0xff]
        %v1152 = vld [vmem:[%s233 + $0x3e0] sm:$0xff]
        %v1153 = vld [vmem:[%s233 + $0x3e8] sm:$0xff]
        %v1154 = vld [vmem:[%s233 + $0x3f0] sm:$0xff]
        %v1155 = vld [vmem:[%s233 + $0x3f8] sm:$0xff]
        %1156 = vmatprep.subr.mxu0 %v1029
        %1157 = vmatpush1.msra.mxu0 %v1028
        %1158 = vmatprep.subr.mxu0 %v1031
        %1159 = vmatpush1.msra.mxu0 %v1030
        %1160 = vmatprep.subr.mxu0 %v1033
        %1161 = vmatpush1.msra.mxu0 %v1032
        %1162 = vmatprep.subr.mxu0 %v1035
        %1163 = vmatpush1.msra.mxu0 %v1034
        %1164 = vmatprep.subr.mxu0 %v1037
        %1165 = vmatpush1.msra.mxu0 %v1036
        %1166 = vmatprep.subr.mxu0 %v1039
        %1167 = vmatpush1.msra.mxu0 %v1038
        %1168 = vmatprep.subr.mxu0 %v1041
        %1169 = vmatpush1.msra.mxu0 %v1040
        %1170 = vmatprep.subr.mxu0 %v1043
        %1171 = vmatpush1.msra.mxu0 %v1042
        %1172 = vmatprep.subr.mxu0 %v1045
        %1173 = vmatpush1.msra.mxu0 %v1044
        %1174 = vmatprep.subr.mxu0 %v1047
        %1175 = vmatpush1.msra.mxu0 %v1046
        %1176 = vmatprep.subr.mxu0 %v1049
        %1177 = vmatpush1.msra.mxu0 %v1048
        %1178 = vmatprep.subr.mxu0 %v1051
        %1179 = vmatpush1.msra.mxu0 %v1050
        %1180 = vmatprep.subr.mxu0 %v1053
        %1181 = vmatpush1.msra.mxu0 %v1052
        %1182 = vmatprep.subr.mxu0 %v1055
        %1183 = vmatpush1.msra.mxu0 %v1054
        %1184 = vmatprep.subr.mxu0 %v1057
        %1185 = vmatpush1.msra.mxu0 %v1056
        %1186 = vmatprep.subr.mxu0 %v1059
        %1187 = vmatpush1.msra.mxu0 %v1058
        %1188 = vmatprep.subr.mxu0 %v1061
        %1189 = vmatpush1.msra.mxu0 %v1060
        %1190 = vmatprep.subr.mxu0 %v1063
        %1191 = vmatpush1.msra.mxu0 %v1062
        %1192 = vmatprep.subr.mxu0 %v1065
        %1193 = vmatpush1.msra.mxu0 %v1064
        %1194 = vmatprep.subr.mxu0 %v1067
        %1195 = vmatpush1.msra.mxu0 %v1066
        %1196 = vmatprep.subr.mxu0 %v1069
        %1197 = vmatpush1.msra.mxu0 %v1068
        %1198 = vmatprep.subr.mxu0 %v1071
        %1199 = vmatpush1.msra.mxu0 %v1070
        %1200 = vmatprep.subr.mxu0 %v1073
        %1201 = vmatpush1.msra.mxu0 %v1072
        %1202 = vmatprep.subr.mxu0 %v1075
        %1203 = vmatpush1.msra.mxu0 %v1074
        %1204 = vmatprep.subr.mxu0 %v1077
        %1205 = vmatpush1.msra.mxu0 %v1076
        %1206 = vmatprep.subr.mxu0 %v1079
        %1207 = vmatpush1.msra.mxu0 %v1078
        %1208 = vmatprep.subr.mxu0 %v1081
        %1209 = vmatpush1.msra.mxu0 %v1080
        %1210 = vmatprep.subr.mxu0 %v1083
        %1211 = vmatpush1.msra.mxu0 %v1082
        %1212 = vmatprep.subr.mxu0 %v1085
        %1213 = vmatpush1.msra.mxu0 %v1084
        %1214 = vmatprep.subr.mxu0 %v1087
        %1215 = vmatpush1.msra.mxu0 %v1086
        %1216 = vmatprep.subr.mxu0 %v1089
        %1217 = vmatpush1.msra.mxu0 %v1088
        %1218 = vmatprep.subr.mxu0 %v1091
        %1219 = vmatpush1.msra.mxu0 %v1090
        %1220 = vmatprep.mubr.f32.mxu0 %v1005
        %1221 = vmatmul.mubr.f32.gmra.mrb[0].mxu0 %v1004
        %v1222 = vpop.f32.mrb[0].mxu0
        %v1223 = vadd.f32 0.0, %v1222
        %v1224 = vpop.f32.mrb[0].mxu0
        %v1225 = vadd.f32 0.0, %v1224
        %1226 = vmatprep.mubr.f32.mxu0 %v1009
        %1227 = vmatmul.mubr.f32.gmra.mrb[0].mxu0 %v1008
        %v1228 = vpop.f32.mrb[0].mxu0
        %v1229 = vadd.f32 0.0, %v1228
        %v1230 = vpop.f32.mrb[0].mxu0
        %v1231 = vadd.f32 0.0, %v1230
        %1232 = vmatprep.mubr.f32.mxu0 %v1013
        %1233 = vmatmul.mubr.f32.gmra.mrb[0].mxu0 %v1012
        %v1234 = vpop.f32.mrb[0].mxu0
        %v1235 = vadd.f32 0.0, %v1234
        %v1236 = vpop.f32.mrb[0].mxu0
        %v1237 = vadd.f32 0.0, %v1236
        %1238 = vmatprep.mubr.f32.mxu0 %v1017
        %1239 = vmatmul.mubr.f32.gmra.mrb[0].mxu0 %v1016
        %v1240 = vpop.f32.mrb[0].mxu0
        %v1241 = vadd.f32 0.0, %v1240
        %v1242 = vpop.f32.mrb[0].mxu0
        %v1243 = vadd.f32 0.0, %v1242
        %1244 = vdwg.mxu0
        %1245 = vmatprep.subr.mxu0 %v1093
        %1246 = vmatpush1.msra.mxu0 %v1092
        %1247 = vmatprep.subr.mxu0 %v1095
        %1248 = vmatpush1.msra.mxu0 %v1094
        %1249 = vmatprep.subr.mxu0 %v1097
        %1250 = vmatpush1.msra.mxu0 %v1096
        %1251 = vmatprep.subr.mxu0 %v1099
        %1252 = vmatpush1.msra.mxu0 %v1098
        %1253 = vmatprep.subr.mxu0 %v1101
        %1254 = vmatpush1.msra.mxu0 %v1100
        %1255 = vmatprep.subr.mxu0 %v1103
        %1256 = vmatpush1.msra.mxu0 %v1102
        %1257 = vmatprep.subr.mxu0 %v1105
        %1258 = vmatpush1.msra.mxu0 %v1104
        %1259 = vmatprep.subr.mxu0 %v1107
        %1260 = vmatpush1.msra.mxu0 %v1106
        %1261 = vmatprep.subr.mxu0 %v1109
        %1262 = vmatpush1.msra.mxu0 %v1108
        %1263 = vmatprep.subr.mxu0 %v1111
        %1264 = vmatpush1.msra.mxu0 %v1110
        %1265 = vmatprep.subr.mxu0 %v1113
        %1266 = vmatpush1.msra.mxu0 %v1112
        %1267 = vmatprep.subr.mxu0 %v1115
        %1268 = vmatpush1.msra.mxu0 %v1114
        %1269 = vmatprep.subr.mxu0 %v1117
        %1270 = vmatpush1.msra.mxu0 %v1116
        %1271 = vmatprep.subr.mxu0 %v1119
        %1272 = vmatpush1.msra.mxu0 %v1118
        %1273 = vmatprep.subr.mxu0 %v1121
        %1274 = vmatpush1.msra.mxu0 %v1120
        %1275 = vmatprep.subr.mxu0 %v1123
        %1276 = vmatpush1.msra.mxu0 %v1122
        %1277 = vmatprep.subr.mxu0 %v1125
        %1278 = vmatpush1.msra.mxu0 %v1124
        %1279 = vmatprep.subr.mxu0 %v1127
        %1280 = vmatpush1.msra.mxu0 %v1126
        %1281 = vmatprep.subr.mxu0 %v1129
        %1282 = vmatpush1.msra.mxu0 %v1128
        %1283 = vmatprep.subr.mxu0 %v1131
        %1284 = vmatpush1.msra.mxu0 %v1130
        %1285 = vmatprep.subr.mxu0 %v1133
        %1286 = vmatpush1.msra.mxu0 %v1132
        %1287 = vmatprep.subr.mxu0 %v1135
        %1288 = vmatpush1.msra.mxu0 %v1134
        %1289 = vmatprep.subr.mxu0 %v1137
        %1290 = vmatpush1.msra.mxu0 %v1136
        %1291 = vmatprep.subr.mxu0 %v1139
        %1292 = vmatpush1.msra.mxu0 %v1138
        %1293 = vmatprep.subr.mxu0 %v1141
        %1294 = vmatpush1.msra.mxu0 %v1140
        %1295 = vmatprep.subr.mxu0 %v1143
        %1296 = vmatpush1.msra.mxu0 %v1142
        %1297 = vmatprep.subr.mxu0 %v1145
        %1298 = vmatpush1.msra.mxu0 %v1144
        %1299 = vmatprep.subr.mxu0 %v1147
        %1300 = vmatpush1.msra.mxu0 %v1146
        %1301 = vmatprep.subr.mxu0 %v1149
        %1302 = vmatpush1.msra.mxu0 %v1148
        %1303 = vmatprep.subr.mxu0 %v1151
        %1304 = vmatpush1.msra.mxu0 %v1150
        %1305 = vmatprep.subr.mxu0 %v1153
        %1306 = vmatpush1.msra.mxu0 %v1152
        %1307 = vmatprep.subr.mxu0 %v1155
        %1308 = vmatpush1.msra.mxu0 %v1154
        %1309 = vmatprep.mubr.f32.mxu0 %v1007
        %1310 = vmatmul.mubr.f32.gmra.mrb[0].mxu0 %v1006
        %v1311 = vpop.f32.mrb[0].mxu0
        %v1312 = vadd.f32 %v1223, %v1311
        %v1313 = vpop.f32.mrb[0].mxu0
        %v1314 = vadd.f32 %v1225, %v1313
        %1315 = vmatprep.mubr.f32.mxu0 %v1011
        %1316 = vmatmul.mubr.f32.gmra.mrb[0].mxu0 %v1010
        %v1317 = vpop.f32.mrb[0].mxu0
        %v1318 = vadd.f32 %v1229, %v1317
        %v1319 = vpop.f32.mrb[0].mxu0
        %v1320 = vadd.f32 %v1231, %v1319
        %1321 = vmatprep.mubr.f32.mxu0 %v1015
        %1322 = vmatmul.mubr.f32.gmra.mrb[0].mxu0 %v1014
        %v1323 = vpop.f32.mrb[0].mxu0
        %v1324 = vadd.f32 %v1235, %v1323
        %v1325 = vpop.f32.mrb[0].mxu0
        %v1326 = vadd.f32 %v1237, %v1325
        %1327 = vmatprep.mubr.f32.mxu0 %v1019
        %1328 = vmatmul.mubr.f32.gmra.mrb[0].mxu0 %v1018
        %v1329 = vpop.f32.mrb[0].mxu0
        %v1330 = vadd.f32 %v1241, %v1329
        %v1331 = vpop.f32.mrb[0].mxu0
        %v1332 = vadd.f32 %v1243, %v1331
        %1333 = vdwg.mxu0
        %v1334 = vadd.f32 %v1020, %v1312
        %v1335 = vadd.f32 %v1021, %v1314
        %v1336 = vadd.f32 %v1022, %v1318
        %v1337 = vadd.f32 %v1023, %v1320
        %v1338 = vadd.f32 %v1024, %v1324
        %v1339 = vadd.f32 %v1025, %v1326
        %v1340 = vadd.f32 %v1026, %v1330
        %v1341 = vadd.f32 %v1027, %v1332
        %1342 = vst [vmem:[#allocation2] sm:$0xff] %v1334
        %1343 = vst [vmem:[#allocation2 + $0x8] sm:$0xff] %v1335
        %1344 = vst [vmem:[#allocation2 + $0x10] sm:$0xff] %v1336
        %1345 = vst [vmem:[#allocation2 + $0x18] sm:$0xff] %v1337
        %1346 = vst [vmem:[#allocation2 + $0x20] sm:$0xff] %v1338
        %1347 = vst [vmem:[#allocation2 + $0x28] sm:$0xff] %v1339
        %1348 = vst [vmem:[#allocation2 + $0x30] sm:$0xff] %v1340
        %1349 = vst [vmem:[#allocation2 + $0x38] sm:$0xff] %v1341
        %p1350 = scmp.eq.s32.totalorder %s24, 1
        // Predicated region
        $region49: #{tpu_custom_call.1} parent=31 // pred_check
          %p1351 = pneg %p1350
        $region50: #{tpu_custom_call.1} parent=31 // pred_check_branch
          %1353 = sbr.rel (%p1351) target = $region52
        $region51: #{tpu_custom_call.1} parent=31 // pred_region
          %v1354 = vld [vmem:[#allocation2] sm:$0xff]
          %v1355 = vld [vmem:[#allocation2 + $0x8] sm:$0xff]
          %v1356 = vld [vmem:[#allocation2 + $0x10] sm:$0xff]
          %v1357 = vld [vmem:[#allocation2 + $0x18] sm:$0xff]
          %v1358 = vld [vmem:[#allocation2 + $0x20] sm:$0xff]
          %v1359 = vld [vmem:[#allocation2 + $0x28] sm:$0xff]
          %v1360 = vld [vmem:[#allocation2 + $0x30] sm:$0xff]
          %v1361 = vld [vmem:[#allocation2 + $0x38] sm:$0xff]
          %1362 = vst [vmem:[#allocation9] sm:$0xff] %v1354
          %1363 = vst [vmem:[#allocation9 + $0x8] sm:$0xff] %v1355
          %1364 = vst [vmem:[#allocation9 + $0x10] sm:$0xff] %v1356
          %1365 = vst [vmem:[#allocation9 + $0x18] sm:$0xff] %v1357
          %1366 = vst [vmem:[#allocation9 + $0x20] sm:$0xff] %v1358
          %1367 = vst [vmem:[#allocation9 + $0x28] sm:$0xff] %v1359
          %1368 = vst [vmem:[#allocation9 + $0x30] sm:$0xff] %v1360
          %1369 = vst [vmem:[#allocation9 + $0x38] sm:$0xff] %v1361
        $region52: #{tpu_custom_call.1} parent=31 // pred_fallthru
          _
        // Predicated region
        $region53: #{tpu_custom_call.1} parent=31 // pred_check
          %p1370 = pneg %p127
        $region54: #{tpu_custom_call.1} parent=31 // pred_check_branch
          %1372 = sbr.rel (%p1370) target = $region56
        $region55: #{tpu_custom_call.1} parent=31 // pred_region
          %s1373 = smul.u32 4, %s23
          %s1375 = ssub.s32 1024, 1024
          %1376 = vsyncadd [#allocation5], %s1375
          %s1377 = smul.addr %s1373, 2
          %s1378 = smul.addr %s1377, 128
          %s1379 = scalar_lea.hbm %s3, %s1378
          %s1380 = sshll.u32 [#allocation9], 4
          %s1381 = int_to_ptr.vmem [resolvable:$true] %s1380
          %1386 = dma.vmem_to_hbm [thread:$0]  %s1381, 1024, %s1379, [#allocation5], 256, 256, 16
        $region56: #{tpu_custom_call.1} parent=31 // pred_fallthru
          _
        // Predicated region
        $region57: #{tpu_custom_call.1} parent=31 // pred_check
          %p1387 = pneg %p127
        $region58: #{tpu_custom_call.1} parent=31 // pred_check_branch
          %1389 = sbr.rel (%p1387) target = $region60
        $region59: #{tpu_custom_call.1} parent=31 // pred_region
          %1390 = dma.done [#allocation5], 1024
        $region60: #{tpu_custom_call.1} parent=31 // pred_fallthru
          _
      $region32: #{tpu_custom_call.1} parent=5 // pred_fallthru
        _
      %p1391 = scmp.le.s32.totalorder 2, %s14
      // Predicated region
      $region61: #{tpu_custom_call.1} parent=5 // pred_check
        %p1392 = pneg %p1391
      $region62: #{tpu_custom_call.1} parent=5 // pred_check_branch
        %1394 = sbr.rel (%p1392) target = $region64
      $region63: #{tpu_custom_call.1} parent=5 // pred_region
        %s1395 = ssub.s32 %s14, 2
      $region64: #{tpu_custom_call.1} parent=5 // pred_fallthru
        _
    $region6: #{tpu_custom_call.1} parent=1 // loop_footer
      %s18 = sadd.s32 1, %s14
    $region7: #{tpu_custom_call.1} parent=1 // loop_footer_branch
      %13 = sbr.rel target = $region3
    $region8: #{tpu_custom_call.1} parent=1 // loop_exit
      _
    %1396 = vsyncpa [#allocation4], 1
    %s1397 = scalar_lea.sflag [#allocation4], 1
    %1398 = vsyncpa %s1397, 1
    %1399 = vsyncpa [#allocation7], 1
    %s1400 = scalar_lea.sflag [#allocation7], 1
    %1401 = vsyncpa %s1400, 1
    %1402 = vsyncpa [#allocation5], 1
    %s1403 = scalar_lea.sflag [#allocation5], 1
    %1404 = vsyncpa %s1403, 1

</llo_original>
